<compile_context>
chip_gen: v7x
topology: tpu7x:2x2x1
jax: 0.10.0
libtpu: 0.0.40
codegen_flags: <defaults>
</compile_context>

<pallas_src>
import math
import functools

import jax
import jax.numpy as jnp
from jax import lax
from jax.experimental import pallas as pl
from jax.experimental.pallas import tpu as pltpu


# ----------------------------------------------------------------------------- QKV projection kernel
def _qkv_proj_kernel(x_ref, wqkv_ref, q_ref, k_ref, v_ref, *, d_model, compute_dtype):
    x = x_ref[0].astype(compute_dtype)                                        # (tq, D) bf16
    qkv = jnp.dot(x, wqkv_ref[...], preferred_element_type=jnp.float32)       # (tq, 3D) f32 acc
    q_ref[0] = qkv[:, :d_model].astype(q_ref.dtype)
    k_ref[0] = qkv[:, d_model:2 * d_model].astype(k_ref.dtype)
    v_ref[0] = qkv[:, 2 * d_model:].astype(v_ref.dtype)


# ----------------------------------------------------------------------------- encoder layer kernel
def _encoder_layer_kernel(x_ref, q_ref, k_ref, v_ref, aw_ref,
                          wo_ref, w1_ref, w2_ref, vecs_ref, o_ref,
                          *, nhead, d_k, d_ff, eps, approx_recip, compute_dtype):
    D = nhead * d_k

    x_tile = x_ref[0]                                   # (tq, D) f32  residual input
    q_tile = q_ref[0]                                   # (tq, D) bf16
    k_all = k_ref[0]                                    # (S,  D) bf16
    v_all = v_ref[0]                                    # (S,  D) bf16

    scale = 1.0 / math.sqrt(d_k)
    head_ctx = []
    for h in range(nhead):                              # static unroll; H is small
        sl = slice(h * d_k, (h + 1) * d_k)
        qh, kh, vh = q_tile[:, sl], k_all[:, sl], v_all[:, sl]

        # QK^T without materializing a transpose: contract the last dims.
        scores = lax.dot_general(qh, kh, (((1,), (1,)), ((), ())),
                                 preferred_element_type=jnp.float32) * scale
        scores = scores - aw_ref[0, h].astype(jnp.float32)    # `scores -= attn_weight`

        # Numerically-stable softmax in f32 (v5e has no bf16 VPU/EUP).
        scores = scores - jnp.max(scores, axis=-1, keepdims=True)
        p = jnp.exp(scores)
        denom = jnp.sum(p, axis=-1, keepdims=True)
        if approx_recip:
            p = p * pl.reciprocal(denom, approx=True)          # EUP slot, nearly free
        else:
            p = p / denom                                      # exact path for validation

        head_ctx.append(jnp.dot(p.astype(compute_dtype), vh,
                                preferred_element_type=jnp.float32))   # (tq, d_k) f32

    # Single (tq,D)@(D,D) output projection instead of H K=d_k matmuls (MXU contraction fill).
    ctx = jnp.concatenate(head_ctx, axis=-1)                            # (tq, D) f32
    src2 = jnp.dot(ctx.astype(compute_dtype), wo_ref[...],
                   preferred_element_type=jnp.float32)                  # (tq, D) f32

    # Packed bias / LayerNorm vectors: rows = [b1, b2, g1, be1, g2, be2, pad, pad].
    vecs = vecs_ref[...]
    b1 = vecs[0:1, :d_ff]
    b2 = vecs[1:2, :D]
    g1, be1 = vecs[2:3, :D], vecs[3:4, :D]
    g2, be2 = vecs[4:5, :D], vecs[5:6, :D]

    def layernorm(y, gamma, beta):
        mu = jnp.mean(y, axis=-1, keepdims=True)
        var = jnp.mean((y - mu) ** 2, axis=-1, keepdims=True)
        return (y - mu) * lax.rsqrt(var + eps) * gamma + beta

    # residual + LN1
    x1 = layernorm(x_tile + src2, g1, be1)

    # position-wise feed-forward (bf16 MXU operands, f32 accumulate, f32 bias/ReLU)
    h1 = jnp.dot(x1.astype(compute_dtype), w1_ref[...],
                 preferred_element_type=jnp.float32) + b1
    h1 = jnp.maximum(h1, 0.0)
    ffn = jnp.dot(h1.astype(compute_dtype), w2_ref[...],
                  preferred_element_type=jnp.float32) + b2

    # residual + LN2
    x2 = layernorm(x1 + ffn, g2, be2)
    o_ref[0] = x2.astype(o_ref.dtype)


# ----------------------------------------------------------------------------- helpers
def _pick_tq(seq_len, requested):
    if requested is not None:
        assert seq_len % requested == 0 and requested % 8 == 0, \
            "tq must be a multiple of 8 and divide the sequence length"
        return requested
    # Largest MXU-friendly tile that divides S (feedback: 128 on v5e, 256 on v6e/v7x).
    for cand in (256, 128, 64, 32, 16, 8):
        if seq_len % cand == 0:
            return cand
    raise ValueError("sequence length must be a multiple of 8")


def _vmem_limit_bytes():
    # Generation-aware budget with headroom: ~48 MiB on v7x (64 MiB phys), ~96 MiB on v5e/v6e (128 MiB).
    try:
        cap = getattr(pltpu.get_tpu_info(), "vmem_capacity_bytes", None)
        if cap:
            return int(cap) * 3 // 4
    except Exception:
        pass
    return 64 * 1024 * 1024


# ----------------------------------------------------------------------------- wrapper
def transformer_encoder_layer(src, attn_weight, params, *, nhead, eps=1e-6, tq=None,
                              compute_dtype=jnp.bfloat16, attn_weight_dtype=jnp.bfloat16,
                              approx_reciprocal=True, single_buffer_weights=True):
    """src: (B, S, D) f32;  attn_weight: (B, nhead, S, S) f32."""
    B, S, D = src.shape
    assert D % nhead == 0
    d_k = D // nhead
    F = params["w1"].shape[1]
    tq = _pick_tq(S, tq)
    n_tq = S // tq
    Fmax = max(D, F)
    vmem_limit = _vmem_limit_bytes()

    # Fuse the q/k/v projections into one (D, 3D) weight; ship all big weights as bf16.
    wqkv = jnp.concatenate([params["wq"], params["wk"], params["wv"]], axis=1).astype(compute_dtype)
    wo = params["wo"].astype(compute_dtype)
    w1 = params["w1"].astype(compute_dtype)
    w2 = params["w2"].astype(compute_dtype)
    aw = attn_weight.astype(attn_weight_dtype)

    # Pack biases + LayerNorm params into one (8, Fmax) f32 operand.
    vecs = jnp.zeros((8, Fmax), jnp.float32)
    vecs = vecs.at[0, :F].set(jnp.reshape(params["b1"], (F,)))
    vecs = vecs.at[1, :D].set(jnp.reshape(params["b2"], (D,)))
    vecs = vecs.at[2, :D].set(jnp.reshape(params["g1"], (D,)))
    vecs = vecs.at[3, :D].set(jnp.reshape(params["be1"], (D,)))
    vecs = vecs.at[4, :D].set(jnp.reshape(params["g2"], (D,)))
    vecs = vecs.at[5, :D].set(jnp.reshape(params["be2"], (D,)))

    # Constant-index parameter blocks: single-buffer them (no re-DMA across the grid).
    if single_buffer_weights:
        def const_spec(shape):
            return pl.BlockSpec(shape, lambda b, t: (0,) * len(shape),
                                pipeline_mode=pl.Buffered(1))
    else:
        def const_spec(shape):
            return pl.BlockSpec(shape, lambda b, t: (0,) * len(shape))

    # --- stage 1: fused QKV projection (hoisted out of the encoder grid), bf16 outputs -----------
    proj_flops = 2 * B * S * D * 3 * D
    proj_bytes = B * S * D * 4 + wqkv.size * 2 + 3 * B * S * D * 2
    qkv_call = pl.pallas_call(
        functools.partial(_qkv_proj_kernel, d_model=D, compute_dtype=compute_dtype),
        out_shape=(jax.ShapeDtypeStruct((B, S, D), compute_dtype),
                   jax.ShapeDtypeStruct((B, S, D), compute_dtype),
                   jax.ShapeDtypeStruct((B, S, D), compute_dtype)),
        grid_spec=pltpu.PrefetchScalarGridSpec(
            num_scalar_prefetch=0,
            grid=(B, n_tq),
            in_specs=[pl.BlockSpec((1, tq, D), lambda b, t: (b, t, 0)),
                      const_spec((D, 3 * D))],
            out_specs=[pl.BlockSpec((1, tq, D), lambda b, t: (b, t, 0)),
                       pl.BlockSpec((1, tq, D), lambda b, t: (b, t, 0)),
                       pl.BlockSpec((1, tq, D), lambda b, t: (b, t, 0))]),
        compiler_params=pltpu.CompilerParams(
            dimension_semantics=("parallel", "parallel"),
            vmem_limit_bytes=vmem_limit),
        cost_estimate=pl.CostEstimate(flops=proj_flops, transcendentals=0,
                                      bytes_accessed=proj_bytes),
    )
    q, k, v = qkv_call(src, wqkv)

    # --- stage 2: attention + residual/LN + FFN + residual/LN ------------------------------------
    aw_itemsize = jnp.dtype(attn_weight_dtype).itemsize
    w_itemsize = jnp.dtype(compute_dtype).itemsize
    flops = 2 * B * S * (2 * S * D + D * D + 2 * D * F)
    transcendentals = B * nhead * S * S
    bytes_accessed = (B * S * D * 4                       # src (residual)
                      + B * S * D * 2 + 2 * B * S * D * 2 # q tiles + k/v (once per batch element)
                      + B * nhead * S * S * aw_itemsize   # attn_weight
                      + (wo.size + w1.size + w2.size) * w_itemsize
                      + vecs.size * 4
                      + B * S * D * 4)                    # output

    kernel = functools.partial(_encoder_layer_kernel, nhead=nhead, d_k=d_k, d_ff=F,
                               eps=eps, approx_recip=approx_reciprocal,
                               compute_dtype=compute_dtype)

    grid_spec = pltpu.PrefetchScalarGridSpec(
        num_scalar_prefetch=0,
        grid=(B, n_tq),
        in_specs=[
            pl.BlockSpec((1, tq, D), lambda b, t: (b, t, 0)),             # src residual tile (f32)
            pl.BlockSpec((1, tq, D), lambda b, t: (b, t, 0)),             # q tile (bf16)
            pl.BlockSpec((1, S, D), lambda b, t: (b, 0, 0)),              # k (bf16, refetched per batch elem)
            pl.BlockSpec((1, S, D), lambda b, t: (b, 0, 0)),              # v (bf16)
            pl.BlockSpec((1, nhead, tq, S), lambda b, t: (b, 0, t, 0)),   # attn_weight tile (bf16)
            const_spec((D, D)),        # wo
            const_spec((D, F)),        # w1
            const_spec((F, D)),        # w2
            const_spec((8, Fmax)),     # packed b1/b2/LN params (f32)
        ],
        out_specs=pl.BlockSpec((1, tq, D), lambda b, t: (b, t, 0)),
    )

    return pl.pallas_call(
        kernel,
        out_shape=jax.ShapeDtypeStruct((B, S, D), jnp.float32),
        grid_spec=grid_spec,
        compiler_params=pltpu.CompilerParams(
            dimension_semantics=("parallel", "parallel"),   # no cross-tile deps -> both axes sharded
            vmem_limit_bytes=vmem_limit),
        cost_estimate=pl.CostEstimate(flops=flops, transcendentals=transcendentals,
                                      bytes_accessed=bytes_accessed),
    )(src, q, k, v, aw, wo, w1, w2, vecs)


# ----------------------------------------------------------------------------- pure-JAX reference
def _reference(src, attn_weight, params, *, nhead, eps=1e-6, matmul_dtype=None,
               attn_weight_dtype=None):
    """Mirrors the PyTorch forward (eval mode). If matmul_dtype is set, matmul operands are cast
    to it with f32 accumulation (the kernel's mixed-precision policy); attn_weight_dtype optionally
    mirrors the kernel's bf16 shipping of the attention bias."""
    B, S, D = src.shape
    d_k = D // nhead
    cast = (lambda a: a.astype(matmul_dtype)) if matmul_dtype is not None else (lambda a: a)
    if attn_weight_dtype is not None:
        attn_weight = attn_weight.astype(attn_weight_dtype).astype(jnp.float32)

    def mm(a, b):
        return jnp.dot(cast(a), cast(b), preferred_element_type=jnp.float32)

    q = mm(src, params["wq"]).reshape(B, S, nhead, d_k).transpose(0, 2, 1, 3)
    k = mm(src, params["wk"]).reshape(B, S, nhead, d_k).transpose(0, 2, 1, 3)
    v = mm(src, params["wv"]).reshape(B, S, nhead, d_k).transpose(0, 2, 1, 3)
    scores = jnp.einsum("bhqd,bhkd->bhqk", cast(q), cast(k),
                        preferred_element_type=jnp.float32) / math.sqrt(d_k)
    scores = scores - attn_weight
    p = jax.nn.softmax(scores, axis=-1)
    o = jnp.einsum("bhqk,bhkd->bhqd", cast(p), cast(v),
                   preferred_element_type=jnp.float32)
    o = o.transpose(0, 2, 1, 3).reshape(B, S, D)
    src2 = mm(o, params["wo"])

    def ln(y, g, b):
        mu = jnp.mean(y, axis=-1, keepdims=True)
        var = jnp.mean((y - mu) ** 2, axis=-1, keepdims=True)
        return (y - mu) * lax.rsqrt(var + eps) * g + b

    x1 = ln(src + src2, params["g1"], params["be1"])
    h1 = jnp.maximum(mm(x1, params["w1"]) + params["b1"], 0.0)
    ffn = mm(h1, params["w2"]) + params["b2"]
    return ln(x1 + ffn, params["g2"], params["be2"])


# ----------------------------------------------------------------------------- demo / self-check
if __name__ == "__main__":
    # Lane-dense, MXU-friendly but still small: batch=2, seq=128, d_model=128, nhead=4, d_ff=256.
    B, S, D, H, FF = 2, 128, 128, 4, 256

    key = jax.random.PRNGKey(0)
    keys = jax.random.split(key, 10)
    init = lambda k, shape, scale=0.1: (scale * jax.random.normal(k, shape)).astype(jnp.float32)

    params = {
        # Linear weights stored pre-transposed so y = x @ w (bias=False for attention, per the module).
        "wq": init(keys[0], (D, D)),
        "wk": init(keys[1], (D, D)),
        "wv": init(keys[2], (D, D)),
        "wo": init(keys[3], (D, D)),
        "w1": init(keys[4], (D, FF)),
        "b1": init(keys[5], (1, FF)),
        "w2": init(keys[6], (FF, D)),
        "b2": init(keys[7], (1, D)),
        "g1": jnp.ones((1, D), jnp.float32),
        "be1": jnp.zeros((1, D), jnp.float32),
        "g2": jnp.ones((1, D), jnp.float32),
        "be2": jnp.zeros((1, D), jnp.float32),
    }

    src = init(keys[8], (B, S, D), scale=1.0)
    attn_weight = init(keys[9], (B, H, S, S), scale=0.5)

    try:
        out = transformer_encoder_layer(src, attn_weight, params, nhead=H)
        out = jax.block_until_ready(out)
    except Exception:
        # Fallback for JAX versions without BlockSpec pipeline_mode single-buffering.
        out = transformer_encoder_layer(src, attn_weight, params, nhead=H,
                                        single_buffer_weights=False)
        out = jax.block_until_ready(out)

    assert out.shape == (B, S, D)
    # Tight check against a reference with the same mixed-precision policy (bf16 matmuls, bf16 bias).
    ref_mixed = _reference(src, attn_weight, params, nhead=H,
                           matmul_dtype=jnp.bfloat16, attn_weight_dtype=jnp.bfloat16)
    assert jnp.allclose(out, ref_mixed, atol=1e-2, rtol=1e-2), "mismatch vs mixed-precision JAX reference"
    # Sanity check against the pure-f32 reference (bf16 MXU rounding only).
    ref_f32 = _reference(src, attn_weight, params, nhead=H)
    assert jnp.allclose(out, ref_f32, atol=1e-1, rtol=1e-1), "mismatch vs f32 JAX reference"

    print("KERNEL_OK")
</pallas_src>

<mosaic_0001>
module attributes {stable_mosaic.version = 11 : i64} {
  func.func @_qkv_proj_kernel(%arg0: i32, %arg1: i32, %arg2: memref<1x128x128xf32, #tpu.memory_space<vmem>>, %arg3: memref<128x384xbf16, #tpu.memory_space<vmem>>, %arg4: memref<1x128x128xbf16, #tpu.memory_space<vmem>>, %arg5: memref<1x128x128xbf16, #tpu.memory_space<vmem>>, %arg6: memref<1x128x128xbf16, #tpu.memory_space<vmem>>) attributes {dimension_semantics = [#tpu.dimension_semantics<parallel>, #tpu.dimension_semantics<parallel>], iteration_bounds = array<i64: 2, 1>, scalar_prefetch = 0 : i64, scratch_operands = 0 : i64, tpu.core_type = #tpu.core_type<tc>, window_params = [{transform_indices = @transform_0, window_bounds = array<i64: 1, 128, 128>}, {pipeline_mode = #tpu.pipeline_mode<synchronous>, transform_indices = @transform_1, window_bounds = array<i64: 128, 384>}, {transform_indices = @transform_2, window_bounds = array<i64: 1, 128, 128>}, {transform_indices = @transform_3, window_bounds = array<i64: 1, 128, 128>}, {transform_indices = @transform_4, window_bounds = array<i64: 1, 128, 128>}]} {
    %c0 = arith.constant 0 : index
    %c0_0 = arith.constant 0 : index
    %c0_1 = arith.constant 0 : index
    %0 = vector.load %arg2[%c0, %c0_0, %c0_1] : memref<1x128x128xf32, #tpu.memory_space<vmem>>, vector<1x128x128xf32>
    %1 = vector.shape_cast %0 : vector<1x128x128xf32> to vector<128x128xf32>
    %2 = arith.truncf %1 : vector<128x128xf32> to vector<128x128xbf16>
    %c0_2 = arith.constant 0 : index
    %c0_3 = arith.constant 0 : index
    %3 = vector.load %arg3[%c0_2, %c0_3] : memref<128x384xbf16, #tpu.memory_space<vmem>>, vector<128x384xbf16>
    %cst = arith.constant dense<0.000000e+00> : vector<128x384xf32>
    %4 = tpu.matmul %2, %3, %cst {dimension_numbers = #tpu.dot_dimension_numbers<[1], [0], [0], [1], [0, 0, 1, 1], [], []>} : vector<128x128xbf16>, vector<128x384xbf16>, vector<128x384xf32> -> vector<128x384xf32>
    %5 = vector.extract_strided_slice %4 {offsets = [0, 0], sizes = [128, 128], strides = [1, 1]} : vector<128x384xf32> to vector<128x128xf32>
    %6 = arith.truncf %5 : vector<128x128xf32> to vector<128x128xbf16>
    %c0_4 = arith.constant 0 : index
    %c0_5 = arith.constant 0 : index
    %c0_6 = arith.constant 0 : index
    %7 = vector.load %arg4[%c0_4, %c0_5, %c0_6] : memref<1x128x128xbf16, #tpu.memory_space<vmem>>, vector<1x128x128xbf16>
    %8 = vector.shape_cast %7 : vector<1x128x128xbf16> to vector<128x128xbf16>
    %9 = vector.shape_cast %6 : vector<128x128xbf16> to vector<1x128x128xbf16>
    tpu.vector_store %arg4[%c0_4, %c0_5, %c0_6], %9 {strides = array<i32>} : memref<1x128x128xbf16, #tpu.memory_space<vmem>>, vector<1x128x128xbf16>,
    %10 = vector.extract_strided_slice %4 {offsets = [0, 128], sizes = [128, 128], strides = [1, 1]} : vector<128x384xf32> to vector<128x128xf32>
    %11 = arith.truncf %10 : vector<128x128xf32> to vector<128x128xbf16>
    %c0_7 = arith.constant 0 : index
    %c0_8 = arith.constant 0 : index
    %c0_9 = arith.constant 0 : index
    %12 = vector.load %arg5[%c0_7, %c0_8, %c0_9] : memref<1x128x128xbf16, #tpu.memory_space<vmem>>, vector<1x128x128xbf16>
    %13 = vector.shape_cast %12 : vector<1x128x128xbf16> to vector<128x128xbf16>
    %14 = vector.shape_cast %11 : vector<128x128xbf16> to vector<1x128x128xbf16>
    tpu.vector_store %arg5[%c0_7, %c0_8, %c0_9], %14 {strides = array<i32>} : memref<1x128x128xbf16, #tpu.memory_space<vmem>>, vector<1x128x128xbf16>,
    %15 = vector.extract_strided_slice %4 {offsets = [0, 256], sizes = [128, 128], strides = [1, 1]} : vector<128x384xf32> to vector<128x128xf32>
    %16 = arith.truncf %15 : vector<128x128xf32> to vector<128x128xbf16>
    %c0_10 = arith.constant 0 : index
    %c0_11 = arith.constant 0 : index
    %c0_12 = arith.constant 0 : index
    %17 = vector.load %arg6[%c0_10, %c0_11, %c0_12] : memref<1x128x128xbf16, #tpu.memory_space<vmem>>, vector<1x128x128xbf16>
    %18 = vector.shape_cast %17 : vector<1x128x128xbf16> to vector<128x128xbf16>
    %19 = vector.shape_cast %16 : vector<128x128xbf16> to vector<1x128x128xbf16>
    tpu.vector_store %arg6[%c0_10, %c0_11, %c0_12], %19 {strides = array<i32>} : memref<1x128x128xbf16, #tpu.memory_space<vmem>>, vector<1x128x128xbf16>,
    return
  }
  func.func @transform_0(%arg0: i32, %arg1: i32) -> (i32, i32, i32) {
    %c0_i32 = arith.constant 0 : i32
    %c0_i32_0 = arith.constant 0 : i32
    return %arg0, %arg1, %c0_i32 : i32, i32, i32
  }
  func.func @transform_1(%arg0: i32, %arg1: i32) -> (i32, i32) {
    %c0_i32 = arith.constant 0 : i32
    %c0_i32_0 = arith.constant 0 : i32
    %c0_i32_1 = arith.constant 0 : i32
    return %c0_i32, %c0_i32_0 : i32, i32
  }
  func.func @transform_2(%arg0: i32, %arg1: i32) -> (i32, i32, i32) {
    %c0_i32 = arith.constant 0 : i32
    %c0_i32_0 = arith.constant 0 : i32
    return %arg0, %arg1, %c0_i32 : i32, i32, i32
  }
  func.func @transform_3(%arg0: i32, %arg1: i32) -> (i32, i32, i32) {
    %c0_i32 = arith.constant 0 : i32
    %c0_i32_0 = arith.constant 0 : i32
    return %arg0, %arg1, %c0_i32 : i32, i32, i32
  }
  func.func @transform_4(%arg0: i32, %arg1: i32) -> (i32, i32, i32) {
    %c0_i32 = arith.constant 0 : i32
    %c0_i32_0 = arith.constant 0 : i32
    return %arg0, %arg1, %c0_i32 : i32, i32, i32
  }
}

module attributes {stable_mosaic.version = 11 : i64} {
  func.func @_qkv_proj_kernel(%arg0: i32, %arg1: i32, %arg2: memref<1x128x128xf32, #tpu.memory_space<vmem>>, %arg3: memref<128x384xbf16, #tpu.memory_space<vmem>>, %arg4: memref<1x128x128xbf16, #tpu.memory_space<vmem>>, %arg5: memref<1x128x128xbf16, #tpu.memory_space<vmem>>, %arg6: memref<1x128x128xbf16, #tpu.memory_space<vmem>>) attributes {dimension_semantics = [#tpu.dimension_semantics<parallel>, #tpu.dimension_semantics<parallel>], iteration_bounds = array<i64: 2, 1>, scalar_prefetch = 0 : i64, scratch_operands = 0 : i64, tpu.core_type = #tpu.core_type<tc>, window_params = [{transform_indices = @transform_0, window_bounds = array<i64: 1, 128, 128>}, {pipeline_mode = #tpu.pipeline_mode<synchronous>, transform_indices = @transform_1, window_bounds = array<i64: 128, 384>}, {transform_indices = @transform_2, window_bounds = array<i64: 1, 128, 128>}, {transform_indices = @transform_3, window_bounds = array<i64: 1, 128, 128>}, {transform_indices = @transform_4, window_bounds = array<i64: 1, 128, 128>}]} {
    %c0 = arith.constant 0 : index
    %c0_0 = arith.constant 0 : index
    %c0_1 = arith.constant 0 : index
    %0 = vector.load %arg2[%c0, %c0_0, %c0_1] : memref<1x128x128xf32, #tpu.memory_space<vmem>>, vector<1x128x128xf32>
    %1 = vector.shape_cast %0 : vector<1x128x128xf32> to vector<128x128xf32>
    %2 = arith.truncf %1 : vector<128x128xf32> to vector<128x128xbf16>
    %c0_2 = arith.constant 0 : index
    %c0_3 = arith.constant 0 : index
    %3 = vector.load %arg3[%c0_2, %c0_3] : memref<128x384xbf16, #tpu.memory_space<vmem>>, vector<128x384xbf16>
    %cst = arith.constant dense<0.000000e+00> : vector<128x384xf32>
    %4 = tpu.matmul %2, %3, %cst {dimension_numbers = #tpu.dot_dimension_numbers<[1], [0], [0], [1], [0, 0, 1, 1], [], []>} : vector<128x128xbf16>, vector<128x384xbf16>, vector<128x384xf32> -> vector<128x384xf32>
    %5 = vector.extract_strided_slice %4 {offsets = [0, 0], sizes = [128, 128], strides = [1, 1]} : vector<128x384xf32> to vector<128x128xf32>
    %6 = arith.truncf %5 : vector<128x128xf32> to vector<128x128xbf16>
    %c0_4 = arith.constant 0 : index
    %c0_5 = arith.constant 0 : index
    %c0_6 = arith.constant 0 : index
    %7 = vector.load %arg4[%c0_4, %c0_5, %c0_6] : memref<1x128x128xbf16, #tpu.memory_space<vmem>>, vector<1x128x128xbf16>
    %8 = vector.shape_cast %7 : vector<1x128x128xbf16> to vector<128x128xbf16>
    %9 = vector.shape_cast %6 : vector<128x128xbf16> to vector<1x128x128xbf16>
    tpu.vector_store %arg4[%c0_4, %c0_5, %c0_6], %9 {strides = array<i32>} : memref<1x128x128xbf16, #tpu.memory_space<vmem>>, vector<1x128x128xbf16>,
    %10 = vector.extract_strided_slice %4 {offsets = [0, 128], sizes = [128, 128], strides = [1, 1]} : vector<128x384xf32> to vector<128x128xf32>
    %11 = arith.truncf %10 : vector<128x128xf32> to vector<128x128xbf16>
    %c0_7 = arith.constant 0 : index
    %c0_8 = arith.constant 0 : index
    %c0_9 = arith.constant 0 : index
    %12 = vector.load %arg5[%c0_7, %c0_8, %c0_9] : memref<1x128x128xbf16, #tpu.memory_space<vmem>>, vector<1x128x128xbf16>
    %13 = vector.shape_cast %12 : vector<1x128x128xbf16> to vector<128x128xbf16>
    %14 = vector.shape_cast %11 : vector<128x128xbf16> to vector<1x128x128xbf16>
    tpu.vector_store %arg5[%c0_7, %c0_8, %c0_9], %14 {strides = array<i32>} : memref<1x128x128xbf16, #tpu.memory_space<vmem>>, vector<1x128x128xbf16>,
    %15 = vector.extract_strided_slice %4 {offsets = [0, 256], sizes = [128, 128], strides = [1, 1]} : vector<128x384xf32> to vector<128x128xf32>
    %16 = arith.truncf %15 : vector<128x128xf32> to vector<128x128xbf16>
    %c0_10 = arith.constant 0 : index
    %c0_11 = arith.constant 0 : index
    %c0_12 = arith.constant 0 : index
    %17 = vector.load %arg6[%c0_10, %c0_11, %c0_12] : memref<1x128x128xbf16, #tpu.memory_space<vmem>>, vector<1x128x128xbf16>
    %18 = vector.shape_cast %17 : vector<1x128x128xbf16> to vector<128x128xbf16>
    %19 = vector.shape_cast %16 : vector<128x128xbf16> to vector<1x128x128xbf16>
    tpu.vector_store %arg6[%c0_10, %c0_11, %c0_12], %19 {strides = array<i32>} : memref<1x128x128xbf16, #tpu.memory_space<vmem>>, vector<1x128x128xbf16>,
    return
  }
  func.func @transform_0(%arg0: i32, %arg1: i32) -> (i32, i32, i32) {
    %c0_i32 = arith.constant 0 : i32
    %c0_i32_0 = arith.constant 0 : i32
    return %arg0, %arg1, %c0_i32 : i32, i32, i32
  }
  func.func @transform_1(%arg0: i32, %arg1: i32) -> (i32, i32) {
    %c0_i32 = arith.constant 0 : i32
    %c0_i32_0 = arith.constant 0 : i32
    %c0_i32_1 = arith.constant 0 : i32
    return %c0_i32, %c0_i32_0 : i32, i32
  }
  func.func @transform_2(%arg0: i32, %arg1: i32) -> (i32, i32, i32) {
    %c0_i32 = arith.constant 0 : i32
    %c0_i32_0 = arith.constant 0 : i32
    return %arg0, %arg1, %c0_i32 : i32, i32, i32
  }
  func.func @transform_3(%arg0: i32, %arg1: i32) -> (i32, i32, i32) {
    %c0_i32 = arith.constant 0 : i32
    %c0_i32_0 = arith.constant 0 : i32
    return %arg0, %arg1, %c0_i32 : i32, i32, i32
  }
  func.func @transform_4(%arg0: i32, %arg1: i32) -> (i32, i32, i32) {
    %c0_i32 = arith.constant 0 : i32
    %c0_i32_0 = arith.constant 0 : i32
    return %arg0, %arg1, %c0_i32 : i32, i32, i32
  }
}

</mosaic_0001>

<llo_original>
// kernel: tpu_custom_call.1
$region0: #{tpu_custom_call.1}
  #allocation0 [shape = 'u32[]', space=smem, size = 0x4, offset = 0x4, fixed_abs, tag = 'smem constant byte address 0x4 - core index']
  #allocation1 [shape = 'u32[144,128]{1,0:T(1,128)}', space=vmem, size = 0x12000, scoped, tag = 'internal scratch']
  %s0 = inlined_call_operand.hbm [shape: f32[2,128,128], index: 0, kind: input, shape index: {}]
  %s1 = inlined_call_operand.hbm [shape: bf16[128,384], index: 1, kind: input, shape index: {}]
  %s2 = inlined_call_operand.hbm [shape: bf16[2,128,128], index: 2, kind: output, shape index: {0}]
  %s3 = inlined_call_operand.hbm [shape: bf16[2,128,128], index: 3, kind: output, shape index: {1}]
  %s4 = inlined_call_operand.hbm [shape: bf16[2,128,128], index: 4, kind: output, shape index: {2}]
  %5 = xla_tuple %s2, %s3, %s4
  %s6 = sld [smem:[#allocation0]]
  $region65: #{tpu_custom_call.1} parent=0
    _
  %s8 = ssub.s32 1, %s6
  %s9 = scalar_select 0, %s8, %s6
  $region1: #{tpu_custom_call.1} parent=0
    #allocation2 [shape = 'u8[131072]{0}', space=vmem, size = 0x20000, scoped, tag = 'input window, operand 0']
    #allocation3 [shape = 's32[2]{0}', space=sflag, size = 0x8, scoped, tag = 'scoped memory for tpu_custom_call.1']
    #allocation4 [shape = 's32[2]{0}', space=sflag, size = 0x8, scoped, tag = 'scoped memory for tpu_custom_call.1']
    #allocation5 [shape = 'u8[98304]{0}', space=vmem, size = 0x18000, scoped, tag = 'input window, operand 1, single buffered']
    #allocation6 [shape = 's32[1]{0}', space=sflag, size = 0x4, scoped, tag = 'scoped memory for tpu_custom_call.1']
    #allocation7 [shape = 'u8[65536]{0}', space=vmem, size = 0x10000, scoped, tag = 'output window, operand 0']
    #allocation8 [shape = 'u8[65536]{0}', space=vmem, size = 0x10000, scoped, tag = 'output window, operand 1']
    #allocation9 [shape = 's32[2]{0}', space=sflag, size = 0x8, scoped, tag = 'scoped memory for tpu_custom_call.1']
    #allocation10 [shape = 'u8[65536]{0}', space=vmem, size = 0x10000, scoped, tag = 'output window, operand 2']
    %10 = vsyncpa [#allocation3], 0
    %s11 = scalar_lea.sflag [#allocation3], 1
    %12 = vsyncpa %s11, 0
    %13 = vsyncpa [#allocation6], 0
    %14 = vsyncpa [#allocation4], 0
    %s15 = scalar_lea.sflag [#allocation4], 1
    %16 = vsyncpa %s15, 0
    %17 = vsyncpa [#allocation9], 0
    %s18 = scalar_lea.sflag [#allocation9], 1
    %19 = vsyncpa %s18, 0
    loop: start=0, step=1, limit=4
    $region2: #{tpu_custom_call.1} parent=1 // loop_pre_header
      _
    $region3: #{tpu_custom_call.1} parent=1 // loop_header
      %s21 = sphi 0, %s25
      %p22 = scmp.ge.s32.totalorder %s21, 4
      %s28 = sphi 0, %s40
      %s29 = sphi 0, %s36
      %s30 = sphi 0, %s28
      %s31 = sphi 0, %s29
      %s32 = sphi 0, %s30
      %s33 = sphi 0, %s31
      %s45 = sphi 0, %s47
      %s48 = sphi 0, %s45
      %s49 = sphi 0, %s48
      %s65 = sphi 0, %s49
      %s69 = sphi 0, %s69
      %s71 = sphi 0, %s69
      %s72 = sphi 0, %s71
      %s86 = sphi 0, %s72
      %s94 = sphi 0, %s96
      %s97 = sphi 0, %s94
      %s98 = sphi 0, %s97
      %s114 = sphi 0, %s98
      %s122 = sphi 0, %s124
      %s125 = sphi 0, %s122
      %s126 = sphi 0, %s125
      %s142 = sphi 0, %s126
      %s150 = sphi 0, %s152
      %s153 = sphi 0, %s150
      %s154 = sphi 0, %s153
      %s170 = sphi 0, %s154
    $region4: #{tpu_custom_call.1} parent=1 // loop_header_branch
      %24 = sbr.rel (%p22) target = $region8
    $region5: #{tpu_custom_call.1} parent=1 // loop_body
      %s26 = ssub.s32 %s21, 1
      %s27 = ssub.s32 %s21, 2
      %s34 = sadd.s32 1, %s29
      %p35 = scmp.ge.s32.totalorder %s34, 1
      %s36 = scalar_select %p35, 0, %s34
      %s37 = sadd.s32 1, %s28
      %s38 = scalar_select %p35, %s37, %s28
      %p39 = scmp.ge.s32.totalorder %s38, 2
      %s40 = scalar_select %p39, 0, %s38
      %s41 = ssub.s32 %s28, %s40
      %s42 = ssub.s32 %s29, %s36
      %s43 = sor.u32 %s41, %s42
      %p44 = scmp.eq.s32.totalorder %s43, 0
      %s46 = sadd.s32 %s45, 1
      %s47 = scalar_select %p44, %s45, %s46
      %p50 = pneg %p44
      %p51 = scmp.eq.s32.totalorder %s21, 1
      %p52 = por %p50, %p51
      %p53 = scmp.ne.s32.totalorder %s45, %s48
      %p54 = scmp.eq.s32.totalorder %s21, 0
      %p55 = por %p53, %p54
      %p56 = scmp.ne.s32.totalorder %s45, %s48
      %p57 = scmp.eq.s32.totalorder %s26, 1
      %p58 = por %p56, %p57
      %p59 = scmp.ne.s32.totalorder %s48, %s49
      %p60 = scmp.eq.s32.totalorder %s26, 0
      %p61 = por %p59, %p60
      %p62 = scmp.ne.s32.totalorder %s48, %s49
      %p63 = scmp.eq.s32.totalorder %s27, 1
      %p64 = por %p62, %p63
      %p66 = scmp.ne.s32.totalorder %s49, %s65
      %p67 = scmp.eq.s32.totalorder %s27, 0
      %p68 = por %p66, %p67
      %s70 = sadd.s32 %s69, 1
      %p73 = scmp.eq.s32.totalorder %s21, 1
      %p74 = scmp.ne.s32.totalorder %s69, %s71
      %p75 = scmp.eq.s32.totalorder %s21, 0
      %p76 = por %p74, %p75
      %p77 = scmp.ne.s32.totalorder %s69, %s71
      %p78 = scmp.eq.s32.totalorder %s26, 1
      %p79 = por %p77, %p78
      %p80 = scmp.ne.s32.totalorder %s71, %s72
      %p81 = scmp.eq.s32.totalorder %s26, 0
      %p82 = por %p80, %p81
      %p83 = scmp.ne.s32.totalorder %s71, %s72
      %p84 = scmp.eq.s32.totalorder %s27, 1
      %p85 = por %p83, %p84
      %p87 = scmp.ne.s32.totalorder %s72, %s86
      %p88 = scmp.eq.s32.totalorder %s27, 0
      %p89 = por %p87, %p88
      %s90 = ssub.s32 %s28, %s40
      %s91 = ssub.s32 %s29, %s36
      %s92 = sor.u32 %s90, %s91
      %p93 = scmp.eq.s32.totalorder %s92, 0
      %s95 = sadd.s32 %s94, 1
      %s96 = scalar_select %p93, %s94, %s95
      %p99 = pneg %p93
      %p100 = scmp.eq.s32.totalorder %s21, 1
      %p101 = por %p99, %p100
      %p102 = scmp.ne.s32.totalorder %s94, %s97
      %p103 = scmp.eq.s32.totalorder %s21, 0
      %p104 = por %p102, %p103
      %p105 = scmp.ne.s32.totalorder %s94, %s97
      %p106 = scmp.eq.s32.totalorder %s26, 1
      %p107 = por %p105, %p106
      %p108 = scmp.ne.s32.totalorder %s97, %s98
      %p109 = scmp.eq.s32.totalorder %s26, 0
      %p110 = por %p108, %p109
      %p111 = scmp.ne.s32.totalorder %s97, %s98
      %p112 = scmp.eq.s32.totalorder %s27, 1
      %p113 = por %p111, %p112
      %p115 = scmp.ne.s32.totalorder %s98, %s114
      %p116 = scmp.eq.s32.totalorder %s27, 0
      %p117 = por %p115, %p116
      %s118 = ssub.s32 %s28, %s40
      %s119 = ssub.s32 %s29, %s36
      %s120 = sor.u32 %s118, %s119
      %p121 = scmp.eq.s32.totalorder %s120, 0
      %s123 = sadd.s32 %s122, 1
      %s124 = scalar_select %p121, %s122, %s123
      %p127 = pneg %p121
      %p128 = scmp.eq.s32.totalorder %s21, 1
      %p129 = por %p127, %p128
      %p130 = scmp.ne.s32.totalorder %s122, %s125
      %p131 = scmp.eq.s32.totalorder %s21, 0
      %p132 = por %p130, %p131
      %p133 = scmp.ne.s32.totalorder %s122, %s125
      %p134 = scmp.eq.s32.totalorder %s26, 1
      %p135 = por %p133, %p134
      %p136 = scmp.ne.s32.totalorder %s125, %s126
      %p137 = scmp.eq.s32.totalorder %s26, 0
      %p138 = por %p136, %p137
      %p139 = scmp.ne.s32.totalorder %s125, %s126
      %p140 = scmp.eq.s32.totalorder %s27, 1
      %p141 = por %p139, %p140
      %p143 = scmp.ne.s32.totalorder %s126, %s142
      %p144 = scmp.eq.s32.totalorder %s27, 0
      %p145 = por %p143, %p144
      %s146 = ssub.s32 %s28, %s40
      %s147 = ssub.s32 %s29, %s36
      %s148 = sor.u32 %s146, %s147
      %p149 = scmp.eq.s32.totalorder %s148, 0
      %s151 = sadd.s32 %s150, 1
      %s152 = scalar_select %p149, %s150, %s151
      %p155 = pneg %p149
      %p156 = scmp.eq.s32.totalorder %s21, 1
      %p157 = por %p155, %p156
      %p158 = scmp.ne.s32.totalorder %s150, %s153
      %p159 = scmp.eq.s32.totalorder %s21, 0
      %p160 = por %p158, %p159
      %p161 = scmp.ne.s32.totalorder %s150, %s153
      %p162 = scmp.eq.s32.totalorder %s26, 1
      %p163 = por %p161, %p162
      %p164 = scmp.ne.s32.totalorder %s153, %s154
      %p165 = scmp.eq.s32.totalorder %s26, 0
      %p166 = por %p164, %p165
      %p167 = scmp.ne.s32.totalorder %s153, %s154
      %p168 = scmp.eq.s32.totalorder %s27, 1
      %p169 = por %p167, %p168
      %p171 = scmp.ne.s32.totalorder %s154, %s170
      %p172 = scmp.eq.s32.totalorder %s27, 0
      %p173 = por %p171, %p172
      %p174 = scmp.le.s32.totalorder 1, %s21
      %p175 = scmp.lt.s32.totalorder %s21, 3
      %p176 = pnand %p174, %p175
      %p177 = pneg %p176
      // Predicated region
      $region9: #{tpu_custom_call.1} parent=5 // pred_check
        _
      $region10: #{tpu_custom_call.1} parent=5 // pred_check_branch
        %179 = sbr.rel (%p176) target = $region12
      $region11: #{tpu_custom_call.1} parent=5 // pred_region
        %s180 = ssub.s32 %s21, 1
        // Predicated region
        $region13: #{tpu_custom_call.1} parent=11 // pred_check
          %p181 = pneg %p82
        $region14: #{tpu_custom_call.1} parent=11 // pred_check_branch
          %183 = sbr.rel (%p181) target = $region16
        $region15: #{tpu_custom_call.1} parent=11 // pred_region
          %s185 = ssub.s32 3072, 3072
          %186 = vsyncadd [#allocation6], %s185
          %s187 = sshll.u32 [#allocation5], 4
          %s188 = int_to_ptr.vmem [resolvable:$true] %s187
          %193 = dma.hbm_to_vmem [thread:$0]  %s1, 3072, %s188, [#allocation6], 192, 192, 12
        $region16: #{tpu_custom_call.1} parent=11 // pred_fallthru
          _
      $region12: #{tpu_custom_call.1} parent=5 // pred_fallthru
        _
      %p194 = scmp.lt.s32.totalorder %s21, 2
      // Predicated region
      $region17: #{tpu_custom_call.1} parent=5 // pred_check
        %p195 = pneg %p194
      $region18: #{tpu_custom_call.1} parent=5 // pred_check_branch
        %197 = sbr.rel (%p195) target = $region20
      $region19: #{tpu_custom_call.1} parent=5 // pred_region
        // Predicated region
        $region21: #{tpu_custom_call.1} parent=19 // pred_check
          %p198 = pneg %p55
        $region22: #{tpu_custom_call.1} parent=19 // pred_check_branch
          %200 = sbr.rel (%p198) target = $region24
        $region23: #{tpu_custom_call.1} parent=19 // pred_region
          %s201 = sand.u32 %s45, 1
          %s202 = scalar_lea.sflag [#allocation3], %s201
          %s203 = sand.u32 %s45, 1
          %s204 = smul.addr %s203, 128
          %s205 = scalar_lea.vmem [#allocation2], %s204
          %s206 = smul.u32 16, %s29
          %s208 = ssub.s32 2048, 2048
          %209 = vsyncadd %s202, %s208
          %s210 = smul.addr %s28, 16
          %s211 = sadd.s32 %s206, %s210
          %s212 = smul.addr %s211, 128
          %s213 = scalar_lea.hbm %s0, %s212
          %s214 = sshll.u32 %s205, 4
          %s215 = int_to_ptr.vmem [resolvable:$true] %s214
          %220 = dma.hbm_to_vmem [thread:$0]  %s213, 2048, %s215, %s202, 128, 128, 8
        $region24: #{tpu_custom_call.1} parent=19 // pred_fallthru
          _
      $region20: #{tpu_custom_call.1} parent=5 // pred_fallthru
        _
      %p221 = scmp.le.s32.totalorder 1, %s21
      %p222 = scmp.lt.s32.totalorder %s21, 3
      %p223 = pnand %p221, %p222
      %p224 = pneg %p223
      // Predicated region
      $region25: #{tpu_custom_call.1} parent=5 // pred_check
        _
      $region26: #{tpu_custom_call.1} parent=5 // pred_check_branch
        %226 = sbr.rel (%p223) target = $region28
      $region27: #{tpu_custom_call.1} parent=5 // pred_region
        %s227 = ssub.s32 %s21, 1
        %s228 = sand.u32 %s48, 1
        %s229 = scalar_lea.sflag [#allocation3], %s228
        %s230 = sand.u32 %s48, 1
        %s231 = smul.addr %s230, 128
        %s232 = scalar_lea.vmem [#allocation2], %s231
        // Predicated region
        $region29: #{tpu_custom_call.1} parent=27 // pred_check
          %p233 = pneg %p61
        $region30: #{tpu_custom_call.1} parent=27 // pred_check_branch
          %235 = sbr.rel (%p233) target = $region32
        $region31: #{tpu_custom_call.1} parent=27 // pred_region
          %236 = dma.done %s229, 2048
        $region32: #{tpu_custom_call.1} parent=27 // pred_fallthru
          _
        // Predicated region
        $region33: #{tpu_custom_call.1} parent=27 // pred_check
          %p237 = pneg %p82
        $region34: #{tpu_custom_call.1} parent=27 // pred_check_branch
          %239 = sbr.rel (%p237) target = $region36
        $region35: #{tpu_custom_call.1} parent=27 // pred_region
          %240 = dma.done [#allocation6], 3072
        $region36: #{tpu_custom_call.1} parent=27 // pred_fallthru
          _
        %s241 = sand.u32 %s48, 1
        %s242 = scalar_lea.sflag [#allocation3], %s241
        %s243 = sand.u32 %s48, 1
        %s244 = smul.addr %s243, 128
        %s245 = scalar_lea.vmem [#allocation2], %s244
        %p246 = pneg %p61
        %p247 = pneg %p58
        %p248 = pneg %p82
        %p249 = pneg %p79
        %p250 = pneg %p110
        %p251 = pneg %p107
        %s252 = sand.u32 %s97, 1
        %s253 = scalar_lea.sflag [#allocation4], %s252
        %s254 = sand.u32 %s97, 1
        %s255 = smul.addr %s254, 64
        %s256 = scalar_lea.vmem [#allocation7], %s255
        %p257 = pneg %p138
        %p258 = pneg %p135
        %s259 = sand.u32 %s26, 1
        %s260 = scalar_lea.sflag [#allocation9], %s259
        %s261 = sand.u32 %s125, 1
        %s262 = smul.addr %s261, 64
        %s263 = scalar_lea.vmem [#allocation8], %s262
        %p264 = pneg %p166
        %p265 = pneg %p163
        %s266 = sand.u32 %s26, 1
        %s267 = scalar_lea.sflag [#allocation9], %s266
        %s268 = sand.u32 %s153, 1
        %s269 = smul.addr %s268, 64
        %s270 = scalar_lea.vmem [#allocation10], %s269
        %s271 = smul.u32 16, %s31
        %s272 = smul.u32 16, %s31
        %s273 = smul.u32 16, %s31
        %s274 = smul.u32 16, %s31
        %v276 = vld [vmem:[%s232] sm:$0xff]
        %v277 = vld [vmem:[%s232 + $0x8] sm:$0xff]
        %v278 = vld [vmem:[%s232 + $0x10] sm:$0xff]
        %v279 = vld [vmem:[%s232 + $0x18] sm:$0xff]
        %v280 = vld [vmem:[%s232 + $0x20] sm:$0xff]
        %v281 = vld [vmem:[%s232 + $0x28] sm:$0xff]
        %v282 = vld [vmem:[%s232 + $0x30] sm:$0xff]
        %v283 = vld [vmem:[%s232 + $0x38] sm:$0xff]
        %v284 = vld [vmem:[%s232 + $0x40] sm:$0xff]
        %v285 = vld [vmem:[%s232 + $0x48] sm:$0xff]
        %v286 = vld [vmem:[%s232 + $0x50] sm:$0xff]
        %v287 = vld [vmem:[%s232 + $0x58] sm:$0xff]
        %v288 = vld [vmem:[%s232 + $0x60] sm:$0xff]
        %v289 = vld [vmem:[%s232 + $0x68] sm:$0xff]
        %v290 = vld [vmem:[%s232 + $0x70] sm:$0xff]
        %v291 = vld [vmem:[%s232 + $0x78] sm:$0xff]
        %v292 = vpack.c.bf16 %v277, %v276
        %v293 = vpack.c.bf16 %v279, %v278
        %v294 = vpack.c.bf16 %v281, %v280
        %v295 = vpack.c.bf16 %v283, %v282
        %v296 = vpack.c.bf16 %v285, %v284
        %v297 = vpack.c.bf16 %v287, %v286
        %v298 = vpack.c.bf16 %v289, %v288
        %v299 = vpack.c.bf16 %v291, %v290
        %v300 = vld [vmem:[#allocation5] sm:$0xff]
        %v301 = vld [vmem:[#allocation5 + $0x8] sm:$0xf]
        %v302 = vld [vmem:[#allocation5 + $0xc] sm:$0xff]
        %v303 = vld [vmem:[#allocation5 + $0x14] sm:$0xf]
        %v304 = vld [vmem:[#allocation5 + $0x18] sm:$0xff]
        %v305 = vld [vmem:[#allocation5 + $0x20] sm:$0xf]
        %v306 = vld [vmem:[#allocation5 + $0x24] sm:$0xff]
        %v307 = vld [vmem:[#allocation5 + $0x2c] sm:$0xf]
        %v308 = vld [vmem:[#allocation5 + $0x30] sm:$0xff]
        %v309 = vld [vmem:[#allocation5 + $0x38] sm:$0xf]
        %v310 = vld [vmem:[#allocation5 + $0x3c] sm:$0xff]
        %v311 = vld [vmem:[#allocation5 + $0x44] sm:$0xf]
        %v312 = vld [vmem:[#allocation5 + $0x48] sm:$0xff]
        %v313 = vld [vmem:[#allocation5 + $0x50] sm:$0xf]
        %v314 = vld [vmem:[#allocation5 + $0x54] sm:$0xff]
        %v315 = vld [vmem:[#allocation5 + $0x5c] sm:$0xf]
        %v316 = vld [vmem:[#allocation5 + $0x60] sm:$0xff]
        %v317 = vld [vmem:[#allocation5 + $0x68] sm:$0xf]
        %v318 = vld [vmem:[#allocation5 + $0x6c] sm:$0xff]
        %v319 = vld [vmem:[#allocation5 + $0x74] sm:$0xf]
        %v320 = vld [vmem:[#allocation5 + $0x78] sm:$0xff]
        %v321 = vld [vmem:[#allocation5 + $0x80] sm:$0xf]
        %v322 = vld [vmem:[#allocation5 + $0x84] sm:$0xff]
        %v323 = vld [vmem:[#allocation5 + $0x8c] sm:$0xf]
        %v324 = vld [vmem:[#allocation5 + $0x90] sm:$0xff]
        %v325 = vld [vmem:[#allocation5 + $0x98] sm:$0xf]
        %v326 = vld [vmem:[#allocation5 + $0x9c] sm:$0xff]
        %v327 = vld [vmem:[#allocation5 + $0xa4] sm:$0xf]
        %v328 = vld [vmem:[#allocation5 + $0xa8] sm:$0xff]
        %v329 = vld [vmem:[#allocation5 + $0xb0] sm:$0xf]
        %v330 = vld [vmem:[#allocation5 + $0xb4] sm:$0xff]
        %v331 = vld [vmem:[#allocation5 + $0xbc] sm:$0xf]
        %v364 = vunpack.c.l.b16 %v300
        %v365 = vunpack.c.h.b16 %v300
        %v366 = vunpack.c.l.b16 %v301
        %v367 = vunpack.c.l.b16 %v302
        %v368 = vunpack.c.h.b16 %v302
        %v369 = vunpack.c.l.b16 %v303
        %v370 = vunpack.c.l.b16 %v304
        %v371 = vunpack.c.h.b16 %v304
        %v372 = vunpack.c.l.b16 %v305
        %v373 = vunpack.c.l.b16 %v306
        %v374 = vunpack.c.h.b16 %v306
        %v375 = vunpack.c.l.b16 %v307
        %v376 = vunpack.c.l.b16 %v308
        %v377 = vunpack.c.h.b16 %v308
        %v378 = vunpack.c.l.b16 %v309
        %v379 = vunpack.c.l.b16 %v310
        %v380 = vunpack.c.h.b16 %v310
        %v381 = vunpack.c.l.b16 %v311
        %v382 = vunpack.c.l.b16 %v312
        %v383 = vunpack.c.h.b16 %v312
        %v384 = vunpack.c.l.b16 %v313
        %v385 = vunpack.c.l.b16 %v314
        %v386 = vunpack.c.h.b16 %v314
        %v387 = vunpack.c.l.b16 %v315
        %v388 = vunpack.c.l.b16 %v316
        %v389 = vunpack.c.h.b16 %v316
        %v390 = vunpack.c.l.b16 %v317
        %v391 = vunpack.c.l.b16 %v318
        %v392 = vunpack.c.h.b16 %v318
        %v393 = vunpack.c.l.b16 %v319
        %v394 = vunpack.c.l.b16 %v320
        %v395 = vunpack.c.h.b16 %v320
        %v396 = vunpack.c.l.b16 %v321
        %v397 = vunpack.c.l.b16 %v322
        %v398 = vunpack.c.h.b16 %v322
        %v399 = vunpack.c.l.b16 %v323
        %v400 = vunpack.c.l.b16 %v324
        %v401 = vunpack.c.h.b16 %v324
        %v402 = vunpack.c.l.b16 %v325
        %v403 = vunpack.c.l.b16 %v326
        %v404 = vunpack.c.h.b16 %v326
        %v405 = vunpack.c.l.b16 %v327
        %v406 = vunpack.c.l.b16 %v328
        %v407 = vunpack.c.h.b16 %v328
        %v408 = vunpack.c.l.b16 %v329
        %v409 = vunpack.c.l.b16 %v330
        %v410 = vunpack.c.h.b16 %v330
        %v411 = vunpack.c.l.b16 %v331
        %v412 = vpack.c.b16 %v367, %v364
        %v413 = vpack.c.b16 %v368, %v365
        %v414 = vpack.c.b16 %v369, %v366
        %v415 = vpack.c.b16 %v373, %v370
        %v416 = vpack.c.b16 %v374, %v371
        %v417 = vpack.c.b16 %v375, %v372
        %v418 = vpack.c.b16 %v379, %v376
        %v419 = vpack.c.b16 %v380, %v377
        %v420 = vpack.c.b16 %v381, %v378
        %v421 = vpack.c.b16 %v385, %v382
        %v422 = vpack.c.b16 %v386, %v383
        %v423 = vpack.c.b16 %v387, %v384
        %v424 = vpack.c.b16 %v391, %v388
        %v425 = vpack.c.b16 %v392, %v389
        %v426 = vpack.c.b16 %v393, %v390
        %v427 = vpack.c.b16 %v397, %v394
        %v428 = vpack.c.b16 %v398, %v395
        %v429 = vpack.c.b16 %v399, %v396
        %v430 = vpack.c.b16 %v403, %v400
        %v431 = vpack.c.b16 %v404, %v401
        %v432 = vpack.c.b16 %v405, %v402
        %v433 = vpack.c.b16 %v409, %v406
        %v434 = vpack.c.b16 %v410, %v407
        %v435 = vpack.c.b16 %v411, %v408
        %460 = vmatprep.subr.bf16.mxu0 %v413
        %461 = vmatpush1.bf16.msra.mxu0 %v412
        %462 = vmatprep.subr.bf16.mxu0 %v416
        %463 = vmatpush1.bf16.msra.mxu0 %v415
        %464 = vmatprep.subr.bf16.mxu0 %v419
        %465 = vmatpush1.bf16.msra.mxu0 %v418
        %466 = vmatprep.subr.bf16.mxu0 %v422
        %467 = vmatpush1.bf16.msra.mxu0 %v421
        %468 = vmatprep.subr.bf16.mxu0 %v425
        %469 = vmatpush1.bf16.msra.mxu0 %v424
        %470 = vmatprep.subr.bf16.mxu0 %v428
        %471 = vmatpush1.bf16.msra.mxu0 %v427
        %472 = vmatprep.subr.bf16.mxu0 %v431
        %473 = vmatpush1.bf16.msra.mxu0 %v430
        %474 = vmatprep.subr.bf16.mxu0 %v434
        %475 = vmatpush1.bf16.msra.mxu0 %v433
        %476 = vmatprep.subr.bf16.mxu0 0
        %477 = vmatpush1.bf16.msra.mxu0 0
        %478 = vmatprep.subr.bf16.mxu0 0
        %479 = vmatpush1.bf16.msra.mxu0 0
        %480 = vmatprep.subr.bf16.mxu0 0
        %481 = vmatpush1.bf16.msra.mxu0 0
        %482 = vmatprep.subr.bf16.mxu0 0
        %483 = vmatpush1.bf16.msra.mxu0 0
        %484 = vmatprep.subr.bf16.mxu0 0
        %485 = vmatpush1.bf16.msra.mxu0 0
        %486 = vmatprep.subr.bf16.mxu0 0
        %487 = vmatpush1.bf16.msra.mxu0 0
        %488 = vmatprep.subr.bf16.mxu0 0
        %489 = vmatpush1.bf16.msra.mxu0 0
        %490 = vmatprep.subr.bf16.mxu0 0
        %491 = vmatpush1.bf16.msra.mxu0 0
        %492 = vmatprep.mubr.bf16.mxu0 0
        %493 = vmatmul.mubr.bf16.gmra.mrb[0].mxu0 %v292
        %v494 = vpop.f32.mrb[0].mxu0
        %v495 = vadd.f32 0.0, %v494
        %v496 = vpop.f32.mrb[0].mxu0
        %v497 = vadd.f32 0.0, %v496
        %v498 = vpop.f32.mrb[0].mxu0
        %v499 = vadd.f32 0.0, %v498
        %v500 = vpop.f32.mrb[0].mxu0
        %v501 = vadd.f32 0.0, %v500
        %502 = vmatprep.mubr.bf16.mxu0 0
        %503 = vmatmul.mubr.bf16.gmra.mrb[0].mxu0 %v293
        %v504 = vpop.f32.mrb[0].mxu0
        %v505 = vadd.f32 0.0, %v504
        %v506 = vpop.f32.mrb[0].mxu0
        %v507 = vadd.f32 0.0, %v506
        %v508 = vpop.f32.mrb[0].mxu0
        %v509 = vadd.f32 0.0, %v508
        %v510 = vpop.f32.mrb[0].mxu0
        %v511 = vadd.f32 0.0, %v510
        %512 = vmatprep.mubr.bf16.mxu0 0
        %513 = vmatmul.mubr.bf16.gmra.mrb[0].mxu0 %v294
        %v514 = vpop.f32.mrb[0].mxu0
        %v515 = vadd.f32 0.0, %v514
        %v516 = vpop.f32.mrb[0].mxu0
        %v517 = vadd.f32 0.0, %v516
        %v518 = vpop.f32.mrb[0].mxu0
        %v519 = vadd.f32 0.0, %v518
        %v520 = vpop.f32.mrb[0].mxu0
        %v521 = vadd.f32 0.0, %v520
        %522 = vmatprep.mubr.bf16.mxu0 0
        %523 = vmatmul.mubr.bf16.gmra.mrb[0].mxu0 %v295
        %v524 = vpop.f32.mrb[0].mxu0
        %v525 = vadd.f32 0.0, %v524
        %v526 = vpop.f32.mrb[0].mxu0
        %v527 = vadd.f32 0.0, %v526
        %v528 = vpop.f32.mrb[0].mxu0
        %v529 = vadd.f32 0.0, %v528
        %v530 = vpop.f32.mrb[0].mxu0
        %v531 = vadd.f32 0.0, %v530
        %532 = vmatprep.mubr.bf16.mxu0 0
        %533 = vmatmul.mubr.bf16.gmra.mrb[0].mxu0 %v296
        %v534 = vpop.f32.mrb[0].mxu0
        %v535 = vadd.f32 0.0, %v534
        %v536 = vpop.f32.mrb[0].mxu0
        %v537 = vadd.f32 0.0, %v536
        %v538 = vpop.f32.mrb[0].mxu0
        %v539 = vadd.f32 0.0, %v538
        %v540 = vpop.f32.mrb[0].mxu0
        %v541 = vadd.f32 0.0, %v540
        %542 = vmatprep.mubr.bf16.mxu0 0
        %543 = vmatmul.mubr.bf16.gmra.mrb[0].mxu0 %v297
        %v544 = vpop.f32.mrb[0].mxu0
        %v545 = vadd.f32 0.0, %v544
        %v546 = vpop.f32.mrb[0].mxu0
        %v547 = vadd.f32 0.0, %v546
        %v548 = vpop.f32.mrb[0].mxu0
        %v549 = vadd.f32 0.0, %v548
        %v550 = vpop.f32.mrb[0].mxu0
        %v551 = vadd.f32 0.0, %v550
        %552 = vmatprep.mubr.bf16.mxu0 0
        %553 = vmatmul.mubr.bf16.gmra.mrb[0].mxu0 %v298
        %v554 = vpop.f32.mrb[0].mxu0
        %v555 = vadd.f32 0.0, %v554
        %v556 = vpop.f32.mrb[0].mxu0
        %v557 = vadd.f32 0.0, %v556
        %v558 = vpop.f32.mrb[0].mxu0
        %v559 = vadd.f32 0.0, %v558
        %v560 = vpop.f32.mrb[0].mxu0
        %v561 = vadd.f32 0.0, %v560
        %562 = vmatprep.mubr.bf16.mxu0 0
        %563 = vmatmul.mubr.bf16.gmra.mrb[0].mxu0 %v299
        %v564 = vpop.f32.mrb[0].mxu0
        %v565 = vadd.f32 0.0, %v564
        %v566 = vpop.f32.mrb[0].mxu0
        %v567 = vadd.f32 0.0, %v566
        %v568 = vpop.f32.mrb[0].mxu0
        %v569 = vadd.f32 0.0, %v568
        %v570 = vpop.f32.mrb[0].mxu0
        %v571 = vadd.f32 0.0, %v570
        %572 = vdwg.mxu0
        %573 = vmatprep.subr.bf16.mxu0 0
        %574 = vmatpush1.bf16.msra.mxu0 %v414
        %575 = vmatprep.subr.bf16.mxu0 0
        %576 = vmatpush1.bf16.msra.mxu0 %v417
        %577 = vmatprep.subr.bf16.mxu0 0
        %578 = vmatpush1.bf16.msra.mxu0 %v420
        %579 = vmatprep.subr.bf16.mxu0 0
        %580 = vmatpush1.bf16.msra.mxu0 %v423
        %581 = vmatprep.subr.bf16.mxu0 0
        %582 = vmatpush1.bf16.msra.mxu0 %v426
        %583 = vmatprep.subr.bf16.mxu0 0
        %584 = vmatpush1.bf16.msra.mxu0 %v429
        %585 = vmatprep.subr.bf16.mxu0 0
        %586 = vmatpush1.bf16.msra.mxu0 %v432
        %587 = vmatprep.subr.bf16.mxu0 0
        %588 = vmatpush1.bf16.msra.mxu0 %v435
        %589 = vmatprep.subr.bf16.mxu0 0
        %590 = vmatpush1.bf16.msra.mxu0 0
        %591 = vmatprep.subr.bf16.mxu0 0
        %592 = vmatpush1.bf16.msra.mxu0 0
        %593 = vmatprep.subr.bf16.mxu0 0
        %594 = vmatpush1.bf16.msra.mxu0 0
        %595 = vmatprep.subr.bf16.mxu0 0
        %596 = vmatpush1.bf16.msra.mxu0 0
        %597 = vmatprep.subr.bf16.mxu0 0
        %598 = vmatpush1.bf16.msra.mxu0 0
        %599 = vmatprep.subr.bf16.mxu0 0
        %600 = vmatpush1.bf16.msra.mxu0 0
        %601 = vmatprep.subr.bf16.mxu0 0
        %602 = vmatpush1.bf16.msra.mxu0 0
        %603 = vmatprep.subr.bf16.mxu0 0
        %604 = vmatpush1.bf16.msra.mxu0 0
        %605 = vmatprep.mubr.bf16.mxu0 0
        %606 = vmatmul.mubr.bf16.gmra.mrb[0].mxu0 %v292
        %v607 = vpop.f32.mrb[0].mxu0
        %v608 = vadd.f32 0.0, %v607
        %v609 = vpop.f32.mrb[0].mxu0
        %v610 = vpop.f32.mrb[0].mxu0
        %v611 = vadd.f32 0.0, %v610
        %v612 = vpop.f32.mrb[0].mxu0
        %613 = vmatprep.mubr.bf16.mxu0 0
        %614 = vmatmul.mubr.bf16.gmra.mrb[0].mxu0 %v293
        %v615 = vpop.f32.mrb[0].mxu0
        %v616 = vadd.f32 0.0, %v615
        %v617 = vpop.f32.mrb[0].mxu0
        %v618 = vpop.f32.mrb[0].mxu0
        %v619 = vadd.f32 0.0, %v618
        %v620 = vpop.f32.mrb[0].mxu0
        %621 = vmatprep.mubr.bf16.mxu0 0
        %622 = vmatmul.mubr.bf16.gmra.mrb[0].mxu0 %v294
        %v623 = vpop.f32.mrb[0].mxu0
        %v624 = vadd.f32 0.0, %v623
        %v625 = vpop.f32.mrb[0].mxu0
        %v626 = vpop.f32.mrb[0].mxu0
        %v627 = vadd.f32 0.0, %v626
        %v628 = vpop.f32.mrb[0].mxu0
        %629 = vmatprep.mubr.bf16.mxu0 0
        %630 = vmatmul.mubr.bf16.gmra.mrb[0].mxu0 %v295
        %v631 = vpop.f32.mrb[0].mxu0
        %v632 = vadd.f32 0.0, %v631
        %v633 = vpop.f32.mrb[0].mxu0
        %v634 = vpop.f32.mrb[0].mxu0
        %v635 = vadd.f32 0.0, %v634
        %v636 = vpop.f32.mrb[0].mxu0
        %637 = vmatprep.mubr.bf16.mxu0 0
        %638 = vmatmul.mubr.bf16.gmra.mrb[0].mxu0 %v296
        %v639 = vpop.f32.mrb[0].mxu0
        %v640 = vadd.f32 0.0, %v639
        %v641 = vpop.f32.mrb[0].mxu0
        %v642 = vpop.f32.mrb[0].mxu0
        %v643 = vadd.f32 0.0, %v642
        %v644 = vpop.f32.mrb[0].mxu0
        %645 = vmatprep.mubr.bf16.mxu0 0
        %646 = vmatmul.mubr.bf16.gmra.mrb[0].mxu0 %v297
        %v647 = vpop.f32.mrb[0].mxu0
        %v648 = vadd.f32 0.0, %v647
        %v649 = vpop.f32.mrb[0].mxu0
        %v650 = vpop.f32.mrb[0].mxu0
        %v651 = vadd.f32 0.0, %v650
        %v652 = vpop.f32.mrb[0].mxu0
        %653 = vmatprep.mubr.bf16.mxu0 0
        %654 = vmatmul.mubr.bf16.gmra.mrb[0].mxu0 %v298
        %v655 = vpop.f32.mrb[0].mxu0
        %v656 = vadd.f32 0.0, %v655
        %v657 = vpop.f32.mrb[0].mxu0
        %v658 = vpop.f32.mrb[0].mxu0
        %v659 = vadd.f32 0.0, %v658
        %v660 = vpop.f32.mrb[0].mxu0
        %661 = vmatprep.mubr.bf16.mxu0 0
        %662 = vmatmul.mubr.bf16.gmra.mrb[0].mxu0 %v299
        %v663 = vpop.f32.mrb[0].mxu0
        %v664 = vadd.f32 0.0, %v663
        %v665 = vpop.f32.mrb[0].mxu0
        %v666 = vpop.f32.mrb[0].mxu0
        %v667 = vadd.f32 0.0, %v666
        %v668 = vpop.f32.mrb[0].mxu0
        %669 = vdwg.mxu0
        %v670 = vpack.c.bf16 %v499, %v495
        %v671 = vpack.c.bf16 %v509, %v505
        %v672 = vpack.c.bf16 %v519, %v515
        %v673 = vpack.c.bf16 %v529, %v525
        %v674 = vpack.c.bf16 %v539, %v535
        %v675 = vpack.c.bf16 %v549, %v545
        %v676 = vpack.c.bf16 %v559, %v555
        %v677 = vpack.c.bf16 %v569, %v565
        %v686 = vunpack.c.l.b16 %v670
        %v687 = vunpack.c.h.b16 %v670
        %v688 = vunpack.c.l.b16 %v671
        %v689 = vunpack.c.h.b16 %v671
        %v690 = vunpack.c.l.b16 %v672
        %v691 = vunpack.c.h.b16 %v672
        %v692 = vunpack.c.l.b16 %v673
        %v693 = vunpack.c.h.b16 %v673
        %v694 = vunpack.c.l.b16 %v674
        %v695 = vunpack.c.h.b16 %v674
        %v696 = vunpack.c.l.b16 %v675
        %v697 = vunpack.c.h.b16 %v675
        %v698 = vunpack.c.l.b16 %v676
        %v699 = vunpack.c.h.b16 %v676
        %v700 = vunpack.c.l.b16 %v677
        %v701 = vunpack.c.h.b16 %v677
        %v702 = vpack.c.b16 %v686, %v686
        %v703 = vpack.c.b16 %v687, %v687
        %v704 = vpack.c.b16 %v688, %v688
        %v705 = vpack.c.b16 %v689, %v689
        %v706 = vpack.c.b16 %v690, %v690
        %v707 = vpack.c.b16 %v691, %v691
        %v708 = vpack.c.b16 %v692, %v692
        %v709 = vpack.c.b16 %v693, %v693
        %v710 = vpack.c.b16 %v694, %v694
        %v711 = vpack.c.b16 %v695, %v695
        %v712 = vpack.c.b16 %v696, %v696
        %v713 = vpack.c.b16 %v697, %v697
        %v714 = vpack.c.b16 %v698, %v698
        %v715 = vpack.c.b16 %v699, %v699
        %v716 = vpack.c.b16 %v700, %v700
        %v717 = vpack.c.b16 %v701, %v701
        %734 = vst [vmem:[%s256] sm:$0xf] %v702
        %735 = vst [vmem:[%s256 + $0x4] sm:$0xf] %v703
        %736 = vst [vmem:[%s256 + $0x8] sm:$0xf] %v704
        %737 = vst [vmem:[%s256 + $0xc] sm:$0xf] %v705
        %738 = vst [vmem:[%s256 + $0x10] sm:$0xf] %v706
        %739 = vst [vmem:[%s256 + $0x14] sm:$0xf] %v707
        %740 = vst [vmem:[%s256 + $0x18] sm:$0xf] %v708
        %741 = vst [vmem:[%s256 + $0x1c] sm:$0xf] %v709
        %742 = vst [vmem:[%s256 + $0x20] sm:$0xf] %v710
        %743 = vst [vmem:[%s256 + $0x24] sm:$0xf] %v711
        %744 = vst [vmem:[%s256 + $0x28] sm:$0xf] %v712
        %745 = vst [vmem:[%s256 + $0x2c] sm:$0xf] %v713
        %746 = vst [vmem:[%s256 + $0x30] sm:$0xf] %v714
        %747 = vst [vmem:[%s256 + $0x34] sm:$0xf] %v715
        %748 = vst [vmem:[%s256 + $0x38] sm:$0xf] %v716
        %749 = vst [vmem:[%s256 + $0x3c] sm:$0xf] %v717
        %v750 = vpack.c.bf16 %v501, %v497
        %v751 = vpack.c.bf16 %v511, %v507
        %v752 = vpack.c.bf16 %v521, %v517
        %v753 = vpack.c.bf16 %v531, %v527
        %v754 = vpack.c.bf16 %v541, %v537
        %v755 = vpack.c.bf16 %v551, %v547
        %v756 = vpack.c.bf16 %v561, %v557
        %v757 = vpack.c.bf16 %v571, %v567
        %v766 = vunpack.c.l.b16 %v750
        %v767 = vunpack.c.h.b16 %v750
        %v768 = vunpack.c.l.b16 %v751
        %v769 = vunpack.c.h.b16 %v751
        %v770 = vunpack.c.l.b16 %v752
        %v771 = vunpack.c.h.b16 %v752
        %v772 = vunpack.c.l.b16 %v753
        %v773 = vunpack.c.h.b16 %v753
        %v774 = vunpack.c.l.b16 %v754
        %v775 = vunpack.c.h.b16 %v754
        %v776 = vunpack.c.l.b16 %v755
        %v777 = vunpack.c.h.b16 %v755
        %v778 = vunpack.c.l.b16 %v756
        %v779 = vunpack.c.h.b16 %v756
        %v780 = vunpack.c.l.b16 %v757
        %v781 = vunpack.c.h.b16 %v757
        %v782 = vpack.c.b16 %v766, %v766
        %v783 = vpack.c.b16 %v767, %v767
        %v784 = vpack.c.b16 %v768, %v768
        %v785 = vpack.c.b16 %v769, %v769
        %v786 = vpack.c.b16 %v770, %v770
        %v787 = vpack.c.b16 %v771, %v771
        %v788 = vpack.c.b16 %v772, %v772
        %v789 = vpack.c.b16 %v773, %v773
        %v790 = vpack.c.b16 %v774, %v774
        %v791 = vpack.c.b16 %v775, %v775
        %v792 = vpack.c.b16 %v776, %v776
        %v793 = vpack.c.b16 %v777, %v777
        %v794 = vpack.c.b16 %v778, %v778
        %v795 = vpack.c.b16 %v779, %v779
        %v796 = vpack.c.b16 %v780, %v780
        %v797 = vpack.c.b16 %v781, %v781
        %814 = vst [vmem:[%s263] sm:$0xf] %v782
        %815 = vst [vmem:[%s263 + $0x4] sm:$0xf] %v783
        %816 = vst [vmem:[%s263 + $0x8] sm:$0xf] %v784
        %817 = vst [vmem:[%s263 + $0xc] sm:$0xf] %v785
        %818 = vst [vmem:[%s263 + $0x10] sm:$0xf] %v786
        %819 = vst [vmem:[%s263 + $0x14] sm:$0xf] %v787
        %820 = vst [vmem:[%s263 + $0x18] sm:$0xf] %v788
        %821 = vst [vmem:[%s263 + $0x1c] sm:$0xf] %v789
        %822 = vst [vmem:[%s263 + $0x20] sm:$0xf] %v790
        %823 = vst [vmem:[%s263 + $0x24] sm:$0xf] %v791
        %824 = vst [vmem:[%s263 + $0x28] sm:$0xf] %v792
        %825 = vst [vmem:[%s263 + $0x2c] sm:$0xf] %v793
        %826 = vst [vmem:[%s263 + $0x30] sm:$0xf] %v794
        %827 = vst [vmem:[%s263 + $0x34] sm:$0xf] %v795
        %828 = vst [vmem:[%s263 + $0x38] sm:$0xf] %v796
        %829 = vst [vmem:[%s263 + $0x3c] sm:$0xf] %v797
        %v830 = vpack.c.bf16 %v611, %v608
        %v831 = vpack.c.bf16 %v619, %v616
        %v832 = vpack.c.bf16 %v627, %v624
        %v833 = vpack.c.bf16 %v635, %v632
        %v834 = vpack.c.bf16 %v643, %v640
        %v835 = vpack.c.bf16 %v651, %v648
        %v836 = vpack.c.bf16 %v659, %v656
        %v837 = vpack.c.bf16 %v667, %v664
        %v846 = vunpack.c.l.b16 %v830
        %v847 = vunpack.c.h.b16 %v830
        %v848 = vunpack.c.l.b16 %v831
        %v849 = vunpack.c.h.b16 %v831
        %v850 = vunpack.c.l.b16 %v832
        %v851 = vunpack.c.h.b16 %v832
        %v852 = vunpack.c.l.b16 %v833
        %v853 = vunpack.c.h.b16 %v833
        %v854 = vunpack.c.l.b16 %v834
        %v855 = vunpack.c.h.b16 %v834
        %v856 = vunpack.c.l.b16 %v835
        %v857 = vunpack.c.h.b16 %v835
        %v858 = vunpack.c.l.b16 %v836
        %v859 = vunpack.c.h.b16 %v836
        %v860 = vunpack.c.l.b16 %v837
        %v861 = vunpack.c.h.b16 %v837
        %v862 = vpack.c.b16 %v846, %v846
        %v863 = vpack.c.b16 %v847, %v847
        %v864 = vpack.c.b16 %v848, %v848
        %v865 = vpack.c.b16 %v849, %v849
        %v866 = vpack.c.b16 %v850, %v850
        %v867 = vpack.c.b16 %v851, %v851
        %v868 = vpack.c.b16 %v852, %v852
        %v869 = vpack.c.b16 %v853, %v853
        %v870 = vpack.c.b16 %v854, %v854
        %v871 = vpack.c.b16 %v855, %v855
        %v872 = vpack.c.b16 %v856, %v856
        %v873 = vpack.c.b16 %v857, %v857
        %v874 = vpack.c.b16 %v858, %v858
        %v875 = vpack.c.b16 %v859, %v859
        %v876 = vpack.c.b16 %v860, %v860
        %v877 = vpack.c.b16 %v861, %v861
        %894 = vst [vmem:[%s270] sm:$0xf] %v862
        %895 = vst [vmem:[%s270 + $0x4] sm:$0xf] %v863
        %896 = vst [vmem:[%s270 + $0x8] sm:$0xf] %v864
        %897 = vst [vmem:[%s270 + $0xc] sm:$0xf] %v865
        %898 = vst [vmem:[%s270 + $0x10] sm:$0xf] %v866
        %899 = vst [vmem:[%s270 + $0x14] sm:$0xf] %v867
        %900 = vst [vmem:[%s270 + $0x18] sm:$0xf] %v868
        %901 = vst [vmem:[%s270 + $0x1c] sm:$0xf] %v869
        %902 = vst [vmem:[%s270 + $0x20] sm:$0xf] %v870
        %903 = vst [vmem:[%s270 + $0x24] sm:$0xf] %v871
        %904 = vst [vmem:[%s270 + $0x28] sm:$0xf] %v872
        %905 = vst [vmem:[%s270 + $0x2c] sm:$0xf] %v873
        %906 = vst [vmem:[%s270 + $0x30] sm:$0xf] %v874
        %907 = vst [vmem:[%s270 + $0x34] sm:$0xf] %v875
        %908 = vst [vmem:[%s270 + $0x38] sm:$0xf] %v876
        %909 = vst [vmem:[%s270 + $0x3c] sm:$0xf] %v877
        %s910 = sand.u32 %s97, 1
        %s911 = scalar_lea.sflag [#allocation4], %s910
        %s912 = sand.u32 %s97, 1
        %s913 = smul.addr %s912, 64
        %s914 = scalar_lea.vmem [#allocation7], %s913
        %s915 = sand.u32 %s26, 1
        %s916 = scalar_lea.sflag [#allocation9], %s915
        %s917 = sand.u32 %s125, 1
        %s918 = smul.addr %s917, 64
        %s919 = scalar_lea.vmem [#allocation8], %s918
        %s920 = sand.u32 %s26, 1
        %s921 = scalar_lea.sflag [#allocation9], %s920
        %s922 = sand.u32 %s153, 1
        %s923 = smul.addr %s922, 64
        %s924 = scalar_lea.vmem [#allocation10], %s923
        // Predicated region
        $region37: #{tpu_custom_call.1} parent=27 // pred_check
          %p925 = pneg %p107
        $region38: #{tpu_custom_call.1} parent=27 // pred_check_branch
          %927 = sbr.rel (%p925) target = $region40
        $region39: #{tpu_custom_call.1} parent=27 // pred_region
          %s928 = smul.u32 16, %s31
          %s930 = ssub.s32 1024, 1024
          %931 = vsyncadd %s911, %s930
          %s932 = smul.addr %s30, 16
          %s933 = sadd.s32 %s928, %s932
          %s934 = smul.addr %s933, 64
          %s935 = scalar_lea.hbm %s2, %s934
          %s936 = sshll.u32 %s914, 4
          %s937 = int_to_ptr.vmem [resolvable:$true] %s936
          %942 = dma.vmem_to_hbm [thread:$0]  %s937, 1024, %s935, %s911, 64, 64, 4
        $region40: #{tpu_custom_call.1} parent=27 // pred_fallthru
          _
        // Predicated region
        $region41: #{tpu_custom_call.1} parent=27 // pred_check
          %p943 = pneg %p135
        $region42: #{tpu_custom_call.1} parent=27 // pred_check_branch
          %945 = sbr.rel (%p943) target = $region44
        $region43: #{tpu_custom_call.1} parent=27 // pred_region
          %s946 = smul.u32 16, %s31
          %s948 = ssub.s32 1024, 1024
          %949 = vsyncadd %s916, %s948
          %s950 = smul.addr %s30, 16
          %s951 = sadd.s32 %s946, %s950
          %s952 = smul.addr %s951, 64
          %s953 = scalar_lea.hbm %s3, %s952
          %s954 = sshll.u32 %s919, 4
          %s955 = int_to_ptr.vmem [resolvable:$true] %s954
          %960 = dma.vmem_to_hbm [thread:$0]  %s955, 1024, %s953, %s916, 64, 64, 4
        $region44: #{tpu_custom_call.1} parent=27 // pred_fallthru
          _
        // Predicated region
        $region45: #{tpu_custom_call.1} parent=27 // pred_check
          %p961 = pneg %p163
        $region46: #{tpu_custom_call.1} parent=27 // pred_check_branch
          %963 = sbr.rel (%p961) target = $region48
        $region47: #{tpu_custom_call.1} parent=27 // pred_region
          %s964 = smul.u32 16, %s31
          %s966 = ssub.s32 1024, 1024
          %967 = vsyncadd %s921, %s966
          %s968 = smul.addr %s30, 16
          %s969 = sadd.s32 %s964, %s968
          %s970 = smul.addr %s969, 64
          %s971 = scalar_lea.hbm %s4, %s970
          %s972 = sshll.u32 %s924, 4
          %s973 = int_to_ptr.vmem [resolvable:$true] %s972
          %978 = dma.vmem_to_hbm [thread:$0]  %s973, 1024, %s971, %s921, 64, 64, 4
        $region48: #{tpu_custom_call.1} parent=27 // pred_fallthru
          _
      $region28: #{tpu_custom_call.1} parent=5 // pred_fallthru
        _
      %p979 = scmp.le.s32.totalorder 2, %s21
      // Predicated region
      $region49: #{tpu_custom_call.1} parent=5 // pred_check
        %p980 = pneg %p979
      $region50: #{tpu_custom_call.1} parent=5 // pred_check_branch
        %982 = sbr.rel (%p980) target = $region52
      $region51: #{tpu_custom_call.1} parent=5 // pred_region
        %s983 = ssub.s32 %s21, 2
        // Predicated region
        $region53: #{tpu_custom_call.1} parent=51 // pred_check
          %p984 = pneg %p113
        $region54: #{tpu_custom_call.1} parent=51 // pred_check_branch
          %986 = sbr.rel (%p984) target = $region56
        $region55: #{tpu_custom_call.1} parent=51 // pred_region
          %s987 = sand.u32 %s98, 1
          %s988 = scalar_lea.sflag [#allocation4], %s987
          %s989 = sand.u32 %s98, 1
          %s990 = smul.addr %s989, 64
          %s991 = scalar_lea.vmem [#allocation7], %s990
          %992 = dma.done %s988, 1024
        $region56: #{tpu_custom_call.1} parent=51 // pred_fallthru
          _
        // Predicated region
        $region57: #{tpu_custom_call.1} parent=51 // pred_check
          %p993 = pneg %p141
        $region58: #{tpu_custom_call.1} parent=51 // pred_check_branch
          %995 = sbr.rel (%p993) target = $region60
        $region59: #{tpu_custom_call.1} parent=51 // pred_region
          %s996 = sand.u32 %s27, 1
          %s997 = scalar_lea.sflag [#allocation9], %s996
          %s998 = sand.u32 %s126, 1
          %s999 = smul.addr %s998, 64
          %s1000 = scalar_lea.vmem [#allocation8], %s999
          %1001 = dma.done %s997, 1024
        $region60: #{tpu_custom_call.1} parent=51 // pred_fallthru
          _
        // Predicated region
        $region61: #{tpu_custom_call.1} parent=51 // pred_check
          %p1002 = pneg %p169
        $region62: #{tpu_custom_call.1} parent=51 // pred_check_branch
          %1004 = sbr.rel (%p1002) target = $region64
        $region63: #{tpu_custom_call.1} parent=51 // pred_region
          %s1005 = sand.u32 %s27, 1
          %s1006 = scalar_lea.sflag [#allocation9], %s1005
          %s1007 = sand.u32 %s154, 1
          %s1008 = smul.addr %s1007, 64
          %s1009 = scalar_lea.vmem [#allocation10], %s1008
          %1010 = dma.done %s1006, 1024
        $region64: #{tpu_custom_call.1} parent=51 // pred_fallthru
          _
      $region52: #{tpu_custom_call.1} parent=5 // pred_fallthru
        _
    $region6: #{tpu_custom_call.1} parent=1 // loop_footer
      %s25 = sadd.s32 1, %s21
    $region7: #{tpu_custom_call.1} parent=1 // loop_footer_branch
      %20 = sbr.rel target = $region3
    $region8: #{tpu_custom_call.1} parent=1 // loop_exit
      _
    %1011 = vsyncpa [#allocation3], 1
    %s1012 = scalar_lea.sflag [#allocation3], 1
    %1013 = vsyncpa %s1012, 1
    %1014 = vsyncpa [#allocation6], 1
    %1015 = vsyncpa [#allocation4], 1
    %s1016 = scalar_lea.sflag [#allocation4], 1
    %1017 = vsyncpa %s1016, 1
    %1018 = vsyncpa [#allocation9], 1
    %s1019 = scalar_lea.sflag [#allocation9], 1
    %1020 = vsyncpa %s1019, 1

// kernel: tpu_custom_call.1
$region0: #{tpu_custom_call.1}
  #allocation0 [shape = 'u32[]', space=smem, size = 0x4, offset = 0x4, fixed_abs, tag = 'smem constant byte address 0x4 - core index']
  #allocation1 [shape = 'u32[144,128]{1,0:T(1,128)}', space=vmem, size = 0x12000, scoped, tag = 'internal scratch']
  %s0 = inlined_call_operand.hbm [shape: f32[2,128,128], index: 0, kind: input, shape index: {}]
  %s1 = inlined_call_operand.hbm [shape: bf16[128,384], index: 1, kind: input, shape index: {}]
  %s2 = inlined_call_operand.hbm [shape: bf16[2,128,128], index: 2, kind: output, shape index: {0}]
  %s3 = inlined_call_operand.hbm [shape: bf16[2,128,128], index: 3, kind: output, shape index: {1}]
  %s4 = inlined_call_operand.hbm [shape: bf16[2,128,128], index: 4, kind: output, shape index: {2}]
  %5 = xla_tuple %s2, %s3, %s4
  %s6 = sld [smem:[#allocation0]]
  $region65: #{tpu_custom_call.1} parent=0
    _
  %s8 = ssub.s32 1, %s6
  %s9 = scalar_select 0, %s8, %s6
  $region1: #{tpu_custom_call.1} parent=0
    #allocation2 [shape = 'u8[131072]{0}', space=vmem, size = 0x20000, scoped, tag = 'input window, operand 0']
    #allocation3 [shape = 's32[2]{0}', space=sflag, size = 0x8, scoped, tag = 'scoped memory for tpu_custom_call.1']
    #allocation4 [shape = 's32[2]{0}', space=sflag, size = 0x8, scoped, tag = 'scoped memory for tpu_custom_call.1']
    #allocation5 [shape = 'u8[98304]{0}', space=vmem, size = 0x18000, scoped, tag = 'input window, operand 1, single buffered']
    #allocation6 [shape = 's32[1]{0}', space=sflag, size = 0x4, scoped, tag = 'scoped memory for tpu_custom_call.1']
    #allocation7 [shape = 'u8[65536]{0}', space=vmem, size = 0x10000, scoped, tag = 'output window, operand 0']
    #allocation8 [shape = 'u8[65536]{0}', space=vmem, size = 0x10000, scoped, tag = 'output window, operand 1']
    #allocation9 [shape = 's32[2]{0}', space=sflag, size = 0x8, scoped, tag = 'scoped memory for tpu_custom_call.1']
    #allocation10 [shape = 'u8[65536]{0}', space=vmem, size = 0x10000, scoped, tag = 'output window, operand 2']
    %10 = vsyncpa [#allocation3], 0
    %s11 = scalar_lea.sflag [#allocation3], 1
    %12 = vsyncpa %s11, 0
    %13 = vsyncpa [#allocation6], 0
    %14 = vsyncpa [#allocation4], 0
    %s15 = scalar_lea.sflag [#allocation4], 1
    %16 = vsyncpa %s15, 0
    %17 = vsyncpa [#allocation9], 0
    %s18 = scalar_lea.sflag [#allocation9], 1
    %19 = vsyncpa %s18, 0
    loop: start=0, step=1, limit=4
    $region2: #{tpu_custom_call.1} parent=1 // loop_pre_header
      _
    $region3: #{tpu_custom_call.1} parent=1 // loop_header
      %s21 = sphi 0, %s25
      %p22 = scmp.ge.s32.totalorder %s21, 4
      %s28 = sphi 0, %s40
      %s29 = sphi 0, %s36
      %s30 = sphi 0, %s28
      %s31 = sphi 0, %s29
      %s32 = sphi 0, %s30
      %s33 = sphi 0, %s31
      %s45 = sphi 0, %s47
      %s48 = sphi 0, %s45
      %s49 = sphi 0, %s48
      %s65 = sphi 0, %s49
      %s69 = sphi 0, %s69
      %s71 = sphi 0, %s69
      %s72 = sphi 0, %s71
      %s86 = sphi 0, %s72
      %s94 = sphi 0, %s96
      %s97 = sphi 0, %s94
      %s98 = sphi 0, %s97
      %s114 = sphi 0, %s98
      %s122 = sphi 0, %s124
      %s125 = sphi 0, %s122
      %s126 = sphi 0, %s125
      %s142 = sphi 0, %s126
      %s150 = sphi 0, %s152
      %s153 = sphi 0, %s150
      %s154 = sphi 0, %s153
      %s170 = sphi 0, %s154
    $region4: #{tpu_custom_call.1} parent=1 // loop_header_branch
      %24 = sbr.rel (%p22) target = $region8
    $region5: #{tpu_custom_call.1} parent=1 // loop_body
      %s26 = ssub.s32 %s21, 1
      %s27 = ssub.s32 %s21, 2
      %s34 = sadd.s32 1, %s29
      %p35 = scmp.ge.s32.totalorder %s34, 1
      %s36 = scalar_select %p35, 0, %s34
      %s37 = sadd.s32 1, %s28
      %s38 = scalar_select %p35, %s37, %s28
      %p39 = scmp.ge.s32.totalorder %s38, 2
      %s40 = scalar_select %p39, 0, %s38
      %s41 = ssub.s32 %s28, %s40
      %s42 = ssub.s32 %s29, %s36
      %s43 = sor.u32 %s41, %s42
      %p44 = scmp.eq.s32.totalorder %s43, 0
      %s46 = sadd.s32 %s45, 1
      %s47 = scalar_select %p44, %s45, %s46
      %p50 = pneg %p44
      %p51 = scmp.eq.s32.totalorder %s21, 1
      %p52 = por %p50, %p51
      %p53 = scmp.ne.s32.totalorder %s45, %s48
      %p54 = scmp.eq.s32.totalorder %s21, 0
      %p55 = por %p53, %p54
      %p56 = scmp.ne.s32.totalorder %s45, %s48
      %p57 = scmp.eq.s32.totalorder %s26, 1
      %p58 = por %p56, %p57
      %p59 = scmp.ne.s32.totalorder %s48, %s49
      %p60 = scmp.eq.s32.totalorder %s26, 0
      %p61 = por %p59, %p60
      %p62 = scmp.ne.s32.totalorder %s48, %s49
      %p63 = scmp.eq.s32.totalorder %s27, 1
      %p64 = por %p62, %p63
      %p66 = scmp.ne.s32.totalorder %s49, %s65
      %p67 = scmp.eq.s32.totalorder %s27, 0
      %p68 = por %p66, %p67
      %s70 = sadd.s32 %s69, 1
      %p73 = scmp.eq.s32.totalorder %s21, 1
      %p74 = scmp.ne.s32.totalorder %s69, %s71
      %p75 = scmp.eq.s32.totalorder %s21, 0
      %p76 = por %p74, %p75
      %p77 = scmp.ne.s32.totalorder %s69, %s71
      %p78 = scmp.eq.s32.totalorder %s26, 1
      %p79 = por %p77, %p78
      %p80 = scmp.ne.s32.totalorder %s71, %s72
      %p81 = scmp.eq.s32.totalorder %s26, 0
      %p82 = por %p80, %p81
      %p83 = scmp.ne.s32.totalorder %s71, %s72
      %p84 = scmp.eq.s32.totalorder %s27, 1
      %p85 = por %p83, %p84
      %p87 = scmp.ne.s32.totalorder %s72, %s86
      %p88 = scmp.eq.s32.totalorder %s27, 0
      %p89 = por %p87, %p88
      %s90 = ssub.s32 %s28, %s40
      %s91 = ssub.s32 %s29, %s36
      %s92 = sor.u32 %s90, %s91
      %p93 = scmp.eq.s32.totalorder %s92, 0
      %s95 = sadd.s32 %s94, 1
      %s96 = scalar_select %p93, %s94, %s95
      %p99 = pneg %p93
      %p100 = scmp.eq.s32.totalorder %s21, 1
      %p101 = por %p99, %p100
      %p102 = scmp.ne.s32.totalorder %s94, %s97
      %p103 = scmp.eq.s32.totalorder %s21, 0
      %p104 = por %p102, %p103
      %p105 = scmp.ne.s32.totalorder %s94, %s97
      %p106 = scmp.eq.s32.totalorder %s26, 1
      %p107 = por %p105, %p106
      %p108 = scmp.ne.s32.totalorder %s97, %s98
      %p109 = scmp.eq.s32.totalorder %s26, 0
      %p110 = por %p108, %p109
      %p111 = scmp.ne.s32.totalorder %s97, %s98
      %p112 = scmp.eq.s32.totalorder %s27, 1
      %p113 = por %p111, %p112
      %p115 = scmp.ne.s32.totalorder %s98, %s114
      %p116 = scmp.eq.s32.totalorder %s27, 0
      %p117 = por %p115, %p116
      %s118 = ssub.s32 %s28, %s40
      %s119 = ssub.s32 %s29, %s36
      %s120 = sor.u32 %s118, %s119
      %p121 = scmp.eq.s32.totalorder %s120, 0
      %s123 = sadd.s32 %s122, 1
      %s124 = scalar_select %p121, %s122, %s123
      %p127 = pneg %p121
      %p128 = scmp.eq.s32.totalorder %s21, 1
      %p129 = por %p127, %p128
      %p130 = scmp.ne.s32.totalorder %s122, %s125
      %p131 = scmp.eq.s32.totalorder %s21, 0
      %p132 = por %p130, %p131
      %p133 = scmp.ne.s32.totalorder %s122, %s125
      %p134 = scmp.eq.s32.totalorder %s26, 1
      %p135 = por %p133, %p134
      %p136 = scmp.ne.s32.totalorder %s125, %s126
      %p137 = scmp.eq.s32.totalorder %s26, 0
      %p138 = por %p136, %p137
      %p139 = scmp.ne.s32.totalorder %s125, %s126
      %p140 = scmp.eq.s32.totalorder %s27, 1
      %p141 = por %p139, %p140
      %p143 = scmp.ne.s32.totalorder %s126, %s142
      %p144 = scmp.eq.s32.totalorder %s27, 0
      %p145 = por %p143, %p144
      %s146 = ssub.s32 %s28, %s40
      %s147 = ssub.s32 %s29, %s36
      %s148 = sor.u32 %s146, %s147
      %p149 = scmp.eq.s32.totalorder %s148, 0
      %s151 = sadd.s32 %s150, 1
      %s152 = scalar_select %p149, %s150, %s151
      %p155 = pneg %p149
      %p156 = scmp.eq.s32.totalorder %s21, 1
      %p157 = por %p155, %p156
      %p158 = scmp.ne.s32.totalorder %s150, %s153
      %p159 = scmp.eq.s32.totalorder %s21, 0
      %p160 = por %p158, %p159
      %p161 = scmp.ne.s32.totalorder %s150, %s153
      %p162 = scmp.eq.s32.totalorder %s26, 1
      %p163 = por %p161, %p162
      %p164 = scmp.ne.s32.totalorder %s153, %s154
      %p165 = scmp.eq.s32.totalorder %s26, 0
      %p166 = por %p164, %p165
      %p167 = scmp.ne.s32.totalorder %s153, %s154
      %p168 = scmp.eq.s32.totalorder %s27, 1
      %p169 = por %p167, %p168
      %p171 = scmp.ne.s32.totalorder %s154, %s170
      %p172 = scmp.eq.s32.totalorder %s27, 0
      %p173 = por %p171, %p172
      %p174 = scmp.le.s32.totalorder 1, %s21
      %p175 = scmp.lt.s32.totalorder %s21, 3
      %p176 = pnand %p174, %p175
      %p177 = pneg %p176
      // Predicated region
      $region9: #{tpu_custom_call.1} parent=5 // pred_check
        _
      $region10: #{tpu_custom_call.1} parent=5 // pred_check_branch
        %179 = sbr.rel (%p176) target = $region12
      $region11: #{tpu_custom_call.1} parent=5 // pred_region
        %s180 = ssub.s32 %s21, 1
        // Predicated region
        $region13: #{tpu_custom_call.1} parent=11 // pred_check
          %p181 = pneg %p82
        $region14: #{tpu_custom_call.1} parent=11 // pred_check_branch
          %183 = sbr.rel (%p181) target = $region16
        $region15: #{tpu_custom_call.1} parent=11 // pred_region
          %s185 = ssub.s32 3072, 3072
          %186 = vsyncadd [#allocation6], %s185
          %s187 = sshll.u32 [#allocation5], 4
          %s188 = int_to_ptr.vmem [resolvable:$true] %s187
          %193 = dma.hbm_to_vmem [thread:$0]  %s1, 3072, %s188, [#allocation6], 192, 192, 12
        $region16: #{tpu_custom_call.1} parent=11 // pred_fallthru
          _
      $region12: #{tpu_custom_call.1} parent=5 // pred_fallthru
        _
      %p194 = scmp.lt.s32.totalorder %s21, 2
      // Predicated region
      $region17: #{tpu_custom_call.1} parent=5 // pred_check
        %p195 = pneg %p194
      $region18: #{tpu_custom_call.1} parent=5 // pred_check_branch
        %197 = sbr.rel (%p195) target = $region20
      $region19: #{tpu_custom_call.1} parent=5 // pred_region
        // Predicated region
        $region21: #{tpu_custom_call.1} parent=19 // pred_check
          %p198 = pneg %p55
        $region22: #{tpu_custom_call.1} parent=19 // pred_check_branch
          %200 = sbr.rel (%p198) target = $region24
        $region23: #{tpu_custom_call.1} parent=19 // pred_region
          %s201 = sand.u32 %s45, 1
          %s202 = scalar_lea.sflag [#allocation3], %s201
          %s203 = sand.u32 %s45, 1
          %s204 = smul.addr %s203, 128
          %s205 = scalar_lea.vmem [#allocation2], %s204
          %s206 = smul.u32 16, %s29
          %s208 = ssub.s32 2048, 2048
          %209 = vsyncadd %s202, %s208
          %s210 = smul.addr %s28, 16
          %s211 = sadd.s32 %s206, %s210
          %s212 = smul.addr %s211, 128
          %s213 = scalar_lea.hbm %s0, %s212
          %s214 = sshll.u32 %s205, 4
          %s215 = int_to_ptr.vmem [resolvable:$true] %s214
          %220 = dma.hbm_to_vmem [thread:$0]  %s213, 2048, %s215, %s202, 128, 128, 8
        $region24: #{tpu_custom_call.1} parent=19 // pred_fallthru
          _
      $region20: #{tpu_custom_call.1} parent=5 // pred_fallthru
        _
      %p221 = scmp.le.s32.totalorder 1, %s21
      %p222 = scmp.lt.s32.totalorder %s21, 3
      %p223 = pnand %p221, %p222
      %p224 = pneg %p223
      // Predicated region
      $region25: #{tpu_custom_call.1} parent=5 // pred_check
        _
      $region26: #{tpu_custom_call.1} parent=5 // pred_check_branch
        %226 = sbr.rel (%p223) target = $region28
      $region27: #{tpu_custom_call.1} parent=5 // pred_region
        %s227 = ssub.s32 %s21, 1
        %s228 = sand.u32 %s48, 1
        %s229 = scalar_lea.sflag [#allocation3], %s228
        %s230 = sand.u32 %s48, 1
        %s231 = smul.addr %s230, 128
        %s232 = scalar_lea.vmem [#allocation2], %s231
        // Predicated region
        $region29: #{tpu_custom_call.1} parent=27 // pred_check
          %p233 = pneg %p61
        $region30: #{tpu_custom_call.1} parent=27 // pred_check_branch
          %235 = sbr.rel (%p233) target = $region32
        $region31: #{tpu_custom_call.1} parent=27 // pred_region
          %236 = dma.done %s229, 2048
        $region32: #{tpu_custom_call.1} parent=27 // pred_fallthru
          _
        // Predicated region
        $region33: #{tpu_custom_call.1} parent=27 // pred_check
          %p237 = pneg %p82
        $region34: #{tpu_custom_call.1} parent=27 // pred_check_branch
          %239 = sbr.rel (%p237) target = $region36
        $region35: #{tpu_custom_call.1} parent=27 // pred_region
          %240 = dma.done [#allocation6], 3072
        $region36: #{tpu_custom_call.1} parent=27 // pred_fallthru
          _
        %s241 = sand.u32 %s48, 1
        %s242 = scalar_lea.sflag [#allocation3], %s241
        %s243 = sand.u32 %s48, 1
        %s244 = smul.addr %s243, 128
        %s245 = scalar_lea.vmem [#allocation2], %s244
        %p246 = pneg %p61
        %p247 = pneg %p58
        %p248 = pneg %p82
        %p249 = pneg %p79
        %p250 = pneg %p110
        %p251 = pneg %p107
        %s252 = sand.u32 %s97, 1
        %s253 = scalar_lea.sflag [#allocation4], %s252
        %s254 = sand.u32 %s97, 1
        %s255 = smul.addr %s254, 64
        %s256 = scalar_lea.vmem [#allocation7], %s255
        %p257 = pneg %p138
        %p258 = pneg %p135
        %s259 = sand.u32 %s26, 1
        %s260 = scalar_lea.sflag [#allocation9], %s259
        %s261 = sand.u32 %s125, 1
        %s262 = smul.addr %s261, 64
        %s263 = scalar_lea.vmem [#allocation8], %s262
        %p264 = pneg %p166
        %p265 = pneg %p163
        %s266 = sand.u32 %s26, 1
        %s267 = scalar_lea.sflag [#allocation9], %s266
        %s268 = sand.u32 %s153, 1
        %s269 = smul.addr %s268, 64
        %s270 = scalar_lea.vmem [#allocation10], %s269
        %s271 = smul.u32 16, %s31
        %s272 = smul.u32 16, %s31
        %s273 = smul.u32 16, %s31
        %s274 = smul.u32 16, %s31
        %v276 = vld [vmem:[%s232] sm:$0xff]
        %v277 = vld [vmem:[%s232 + $0x8] sm:$0xff]
        %v278 = vld [vmem:[%s232 + $0x10] sm:$0xff]
        %v279 = vld [vmem:[%s232 + $0x18] sm:$0xff]
        %v280 = vld [vmem:[%s232 + $0x20] sm:$0xff]
        %v281 = vld [vmem:[%s232 + $0x28] sm:$0xff]
        %v282 = vld [vmem:[%s232 + $0x30] sm:$0xff]
        %v283 = vld [vmem:[%s232 + $0x38] sm:$0xff]
        %v284 = vld [vmem:[%s232 + $0x40] sm:$0xff]
        %v285 = vld [vmem:[%s232 + $0x48] sm:$0xff]
        %v286 = vld [vmem:[%s232 + $0x50] sm:$0xff]
        %v287 = vld [vmem:[%s232 + $0x58] sm:$0xff]
        %v288 = vld [vmem:[%s232 + $0x60] sm:$0xff]
        %v289 = vld [vmem:[%s232 + $0x68] sm:$0xff]
        %v290 = vld [vmem:[%s232 + $0x70] sm:$0xff]
        %v291 = vld [vmem:[%s232 + $0x78] sm:$0xff]
        %v292 = vpack.c.bf16 %v277, %v276
        %v293 = vpack.c.bf16 %v279, %v278
        %v294 = vpack.c.bf16 %v281, %v280
        %v295 = vpack.c.bf16 %v283, %v282
        %v296 = vpack.c.bf16 %v285, %v284
        %v297 = vpack.c.bf16 %v287, %v286
        %v298 = vpack.c.bf16 %v289, %v288
        %v299 = vpack.c.bf16 %v291, %v290
        %v300 = vld [vmem:[#allocation5] sm:$0xff]
        %v301 = vld [vmem:[#allocation5 + $0x8] sm:$0xf]
        %v302 = vld [vmem:[#allocation5 + $0xc] sm:$0xff]
        %v303 = vld [vmem:[#allocation5 + $0x14] sm:$0xf]
        %v304 = vld [vmem:[#allocation5 + $0x18] sm:$0xff]
        %v305 = vld [vmem:[#allocation5 + $0x20] sm:$0xf]
        %v306 = vld [vmem:[#allocation5 + $0x24] sm:$0xff]
        %v307 = vld [vmem:[#allocation5 + $0x2c] sm:$0xf]
        %v308 = vld [vmem:[#allocation5 + $0x30] sm:$0xff]
        %v309 = vld [vmem:[#allocation5 + $0x38] sm:$0xf]
        %v310 = vld [vmem:[#allocation5 + $0x3c] sm:$0xff]
        %v311 = vld [vmem:[#allocation5 + $0x44] sm:$0xf]
        %v312 = vld [vmem:[#allocation5 + $0x48] sm:$0xff]
        %v313 = vld [vmem:[#allocation5 + $0x50] sm:$0xf]
        %v314 = vld [vmem:[#allocation5 + $0x54] sm:$0xff]
        %v315 = vld [vmem:[#allocation5 + $0x5c] sm:$0xf]
        %v316 = vld [vmem:[#allocation5 + $0x60] sm:$0xff]
        %v317 = vld [vmem:[#allocation5 + $0x68] sm:$0xf]
        %v318 = vld [vmem:[#allocation5 + $0x6c] sm:$0xff]
        %v319 = vld [vmem:[#allocation5 + $0x74] sm:$0xf]
        %v320 = vld [vmem:[#allocation5 + $0x78] sm:$0xff]
        %v321 = vld [vmem:[#allocation5 + $0x80] sm:$0xf]
        %v322 = vld [vmem:[#allocation5 + $0x84] sm:$0xff]
        %v323 = vld [vmem:[#allocation5 + $0x8c] sm:$0xf]
        %v324 = vld [vmem:[#allocation5 + $0x90] sm:$0xff]
        %v325 = vld [vmem:[#allocation5 + $0x98] sm:$0xf]
        %v326 = vld [vmem:[#allocation5 + $0x9c] sm:$0xff]
        %v327 = vld [vmem:[#allocation5 + $0xa4] sm:$0xf]
        %v328 = vld [vmem:[#allocation5 + $0xa8] sm:$0xff]
        %v329 = vld [vmem:[#allocation5 + $0xb0] sm:$0xf]
        %v330 = vld [vmem:[#allocation5 + $0xb4] sm:$0xff]
        %v331 = vld [vmem:[#allocation5 + $0xbc] sm:$0xf]
        %v364 = vunpack.c.l.b16 %v300
        %v365 = vunpack.c.h.b16 %v300
        %v366 = vunpack.c.l.b16 %v301
        %v367 = vunpack.c.l.b16 %v302
        %v368 = vunpack.c.h.b16 %v302
        %v369 = vunpack.c.l.b16 %v303
        %v370 = vunpack.c.l.b16 %v304
        %v371 = vunpack.c.h.b16 %v304
        %v372 = vunpack.c.l.b16 %v305
        %v373 = vunpack.c.l.b16 %v306
        %v374 = vunpack.c.h.b16 %v306
        %v375 = vunpack.c.l.b16 %v307
        %v376 = vunpack.c.l.b16 %v308
        %v377 = vunpack.c.h.b16 %v308
        %v378 = vunpack.c.l.b16 %v309
        %v379 = vunpack.c.l.b16 %v310
        %v380 = vunpack.c.h.b16 %v310
        %v381 = vunpack.c.l.b16 %v311
        %v382 = vunpack.c.l.b16 %v312
        %v383 = vunpack.c.h.b16 %v312
        %v384 = vunpack.c.l.b16 %v313
        %v385 = vunpack.c.l.b16 %v314
        %v386 = vunpack.c.h.b16 %v314
        %v387 = vunpack.c.l.b16 %v315
        %v388 = vunpack.c.l.b16 %v316
        %v389 = vunpack.c.h.b16 %v316
        %v390 = vunpack.c.l.b16 %v317
        %v391 = vunpack.c.l.b16 %v318
        %v392 = vunpack.c.h.b16 %v318
        %v393 = vunpack.c.l.b16 %v319
        %v394 = vunpack.c.l.b16 %v320
        %v395 = vunpack.c.h.b16 %v320
        %v396 = vunpack.c.l.b16 %v321
        %v397 = vunpack.c.l.b16 %v322
        %v398 = vunpack.c.h.b16 %v322
        %v399 = vunpack.c.l.b16 %v323
        %v400 = vunpack.c.l.b16 %v324
        %v401 = vunpack.c.h.b16 %v324
        %v402 = vunpack.c.l.b16 %v325
        %v403 = vunpack.c.l.b16 %v326
        %v404 = vunpack.c.h.b16 %v326
        %v405 = vunpack.c.l.b16 %v327
        %v406 = vunpack.c.l.b16 %v328
        %v407 = vunpack.c.h.b16 %v328
        %v408 = vunpack.c.l.b16 %v329
        %v409 = vunpack.c.l.b16 %v330
        %v410 = vunpack.c.h.b16 %v330
        %v411 = vunpack.c.l.b16 %v331
        %v412 = vpack.c.b16 %v367, %v364
        %v413 = vpack.c.b16 %v368, %v365
        %v414 = vpack.c.b16 %v369, %v366
        %v415 = vpack.c.b16 %v373, %v370
        %v416 = vpack.c.b16 %v374, %v371
        %v417 = vpack.c.b16 %v375, %v372
        %v418 = vpack.c.b16 %v379, %v376
        %v419 = vpack.c.b16 %v380, %v377
        %v420 = vpack.c.b16 %v381, %v378
        %v421 = vpack.c.b16 %v385, %v382
        %v422 = vpack.c.b16 %v386, %v383
        %v423 = vpack.c.b16 %v387, %v384
        %v424 = vpack.c.b16 %v391, %v388
        %v425 = vpack.c.b16 %v392, %v389
        %v426 = vpack.c.b16 %v393, %v390
        %v427 = vpack.c.b16 %v397, %v394
        %v428 = vpack.c.b16 %v398, %v395
        %v429 = vpack.c.b16 %v399, %v396
        %v430 = vpack.c.b16 %v403, %v400
        %v431 = vpack.c.b16 %v404, %v401
        %v432 = vpack.c.b16 %v405, %v402
        %v433 = vpack.c.b16 %v409, %v406
        %v434 = vpack.c.b16 %v410, %v407
        %v435 = vpack.c.b16 %v411, %v408
        %460 = vmatprep.subr.bf16.mxu0 %v413
        %461 = vmatpush1.bf16.msra.mxu0 %v412
        %462 = vmatprep.subr.bf16.mxu0 %v416
        %463 = vmatpush1.bf16.msra.mxu0 %v415
        %464 = vmatprep.subr.bf16.mxu0 %v419
        %465 = vmatpush1.bf16.msra.mxu0 %v418
        %466 = vmatprep.subr.bf16.mxu0 %v422
        %467 = vmatpush1.bf16.msra.mxu0 %v421
        %468 = vmatprep.subr.bf16.mxu0 %v425
        %469 = vmatpush1.bf16.msra.mxu0 %v424
        %470 = vmatprep.subr.bf16.mxu0 %v428
        %471 = vmatpush1.bf16.msra.mxu0 %v427
        %472 = vmatprep.subr.bf16.mxu0 %v431
        %473 = vmatpush1.bf16.msra.mxu0 %v430
        %474 = vmatprep.subr.bf16.mxu0 %v434
        %475 = vmatpush1.bf16.msra.mxu0 %v433
        %476 = vmatprep.subr.bf16.mxu0 0
        %477 = vmatpush1.bf16.msra.mxu0 0
        %478 = vmatprep.subr.bf16.mxu0 0
        %479 = vmatpush1.bf16.msra.mxu0 0
        %480 = vmatprep.subr.bf16.mxu0 0
        %481 = vmatpush1.bf16.msra.mxu0 0
        %482 = vmatprep.subr.bf16.mxu0 0
        %483 = vmatpush1.bf16.msra.mxu0 0
        %484 = vmatprep.subr.bf16.mxu0 0
        %485 = vmatpush1.bf16.msra.mxu0 0
        %486 = vmatprep.subr.bf16.mxu0 0
        %487 = vmatpush1.bf16.msra.mxu0 0
        %488 = vmatprep.subr.bf16.mxu0 0
        %489 = vmatpush1.bf16.msra.mxu0 0
        %490 = vmatprep.subr.bf16.mxu0 0
        %491 = vmatpush1.bf16.msra.mxu0 0
        %492 = vmatprep.mubr.bf16.mxu0 0
        %493 = vmatmul.mubr.bf16.gmra.mrb[0].mxu0 %v292
        %v494 = vpop.f32.mrb[0].mxu0
        %v495 = vadd.f32 0.0, %v494
        %v496 = vpop.f32.mrb[0].mxu0
        %v497 = vadd.f32 0.0, %v496
        %v498 = vpop.f32.mrb[0].mxu0
        %v499 = vadd.f32 0.0, %v498
        %v500 = vpop.f32.mrb[0].mxu0
        %v501 = vadd.f32 0.0, %v500
        %502 = vmatprep.mubr.bf16.mxu0 0
        %503 = vmatmul.mubr.bf16.gmra.mrb[0].mxu0 %v293
        %v504 = vpop.f32.mrb[0].mxu0
        %v505 = vadd.f32 0.0, %v504
        %v506 = vpop.f32.mrb[0].mxu0
        %v507 = vadd.f32 0.0, %v506
        %v508 = vpop.f32.mrb[0].mxu0
        %v509 = vadd.f32 0.0, %v508
        %v510 = vpop.f32.mrb[0].mxu0
        %v511 = vadd.f32 0.0, %v510
        %512 = vmatprep.mubr.bf16.mxu0 0
        %513 = vmatmul.mubr.bf16.gmra.mrb[0].mxu0 %v294
        %v514 = vpop.f32.mrb[0].mxu0
        %v515 = vadd.f32 0.0, %v514
        %v516 = vpop.f32.mrb[0].mxu0
        %v517 = vadd.f32 0.0, %v516
        %v518 = vpop.f32.mrb[0].mxu0
        %v519 = vadd.f32 0.0, %v518
        %v520 = vpop.f32.mrb[0].mxu0
        %v521 = vadd.f32 0.0, %v520
        %522 = vmatprep.mubr.bf16.mxu0 0
        %523 = vmatmul.mubr.bf16.gmra.mrb[0].mxu0 %v295
        %v524 = vpop.f32.mrb[0].mxu0
        %v525 = vadd.f32 0.0, %v524
        %v526 = vpop.f32.mrb[0].mxu0
        %v527 = vadd.f32 0.0, %v526
        %v528 = vpop.f32.mrb[0].mxu0
        %v529 = vadd.f32 0.0, %v528
        %v530 = vpop.f32.mrb[0].mxu0
        %v531 = vadd.f32 0.0, %v530
        %532 = vmatprep.mubr.bf16.mxu0 0
        %533 = vmatmul.mubr.bf16.gmra.mrb[0].mxu0 %v296
        %v534 = vpop.f32.mrb[0].mxu0
        %v535 = vadd.f32 0.0, %v534
        %v536 = vpop.f32.mrb[0].mxu0
        %v537 = vadd.f32 0.0, %v536
        %v538 = vpop.f32.mrb[0].mxu0
        %v539 = vadd.f32 0.0, %v538
        %v540 = vpop.f32.mrb[0].mxu0
        %v541 = vadd.f32 0.0, %v540
        %542 = vmatprep.mubr.bf16.mxu0 0
        %543 = vmatmul.mubr.bf16.gmra.mrb[0].mxu0 %v297
        %v544 = vpop.f32.mrb[0].mxu0
        %v545 = vadd.f32 0.0, %v544
        %v546 = vpop.f32.mrb[0].mxu0
        %v547 = vadd.f32 0.0, %v546
        %v548 = vpop.f32.mrb[0].mxu0
        %v549 = vadd.f32 0.0, %v548
        %v550 = vpop.f32.mrb[0].mxu0
        %v551 = vadd.f32 0.0, %v550
        %552 = vmatprep.mubr.bf16.mxu0 0
        %553 = vmatmul.mubr.bf16.gmra.mrb[0].mxu0 %v298
        %v554 = vpop.f32.mrb[0].mxu0
        %v555 = vadd.f32 0.0, %v554
        %v556 = vpop.f32.mrb[0].mxu0
        %v557 = vadd.f32 0.0, %v556
        %v558 = vpop.f32.mrb[0].mxu0
        %v559 = vadd.f32 0.0, %v558
        %v560 = vpop.f32.mrb[0].mxu0
        %v561 = vadd.f32 0.0, %v560
        %562 = vmatprep.mubr.bf16.mxu0 0
        %563 = vmatmul.mubr.bf16.gmra.mrb[0].mxu0 %v299
        %v564 = vpop.f32.mrb[0].mxu0
        %v565 = vadd.f32 0.0, %v564
        %v566 = vpop.f32.mrb[0].mxu0
        %v567 = vadd.f32 0.0, %v566
        %v568 = vpop.f32.mrb[0].mxu0
        %v569 = vadd.f32 0.0, %v568
        %v570 = vpop.f32.mrb[0].mxu0
        %v571 = vadd.f32 0.0, %v570
        %572 = vdwg.mxu0
        %573 = vmatprep.subr.bf16.mxu0 0
        %574 = vmatpush1.bf16.msra.mxu0 %v414
        %575 = vmatprep.subr.bf16.mxu0 0
        %576 = vmatpush1.bf16.msra.mxu0 %v417
        %577 = vmatprep.subr.bf16.mxu0 0
        %578 = vmatpush1.bf16.msra.mxu0 %v420
        %579 = vmatprep.subr.bf16.mxu0 0
        %580 = vmatpush1.bf16.msra.mxu0 %v423
        %581 = vmatprep.subr.bf16.mxu0 0
        %582 = vmatpush1.bf16.msra.mxu0 %v426
        %583 = vmatprep.subr.bf16.mxu0 0
        %584 = vmatpush1.bf16.msra.mxu0 %v429
        %585 = vmatprep.subr.bf16.mxu0 0
        %586 = vmatpush1.bf16.msra.mxu0 %v432
        %587 = vmatprep.subr.bf16.mxu0 0
        %588 = vmatpush1.bf16.msra.mxu0 %v435
        %589 = vmatprep.subr.bf16.mxu0 0
        %590 = vmatpush1.bf16.msra.mxu0 0
        %591 = vmatprep.subr.bf16.mxu0 0
        %592 = vmatpush1.bf16.msra.mxu0 0
        %593 = vmatprep.subr.bf16.mxu0 0
        %594 = vmatpush1.bf16.msra.mxu0 0
        %595 = vmatprep.subr.bf16.mxu0 0
        %596 = vmatpush1.bf16.msra.mxu0 0
        %597 = vmatprep.subr.bf16.mxu0 0
        %598 = vmatpush1.bf16.msra.mxu0 0
        %599 = vmatprep.subr.bf16.mxu0 0
        %600 = vmatpush1.bf16.msra.mxu0 0
        %601 = vmatprep.subr.bf16.mxu0 0
        %602 = vmatpush1.bf16.msra.mxu0 0
        %603 = vmatprep.subr.bf16.mxu0 0
        %604 = vmatpush1.bf16.msra.mxu0 0
        %605 = vmatprep.mubr.bf16.mxu0 0
        %606 = vmatmul.mubr.bf16.gmra.mrb[0].mxu0 %v292
        %v607 = vpop.f32.mrb[0].mxu0
        %v608 = vadd.f32 0.0, %v607
        %v609 = vpop.f32.mrb[0].mxu0
        %v610 = vpop.f32.mrb[0].mxu0
        %v611 = vadd.f32 0.0, %v610
        %v612 = vpop.f32.mrb[0].mxu0
        %613 = vmatprep.mubr.bf16.mxu0 0
        %614 = vmatmul.mubr.bf16.gmra.mrb[0].mxu0 %v293
        %v615 = vpop.f32.mrb[0].mxu0
        %v616 = vadd.f32 0.0, %v615
        %v617 = vpop.f32.mrb[0].mxu0
        %v618 = vpop.f32.mrb[0].mxu0
        %v619 = vadd.f32 0.0, %v618
        %v620 = vpop.f32.mrb[0].mxu0
        %621 = vmatprep.mubr.bf16.mxu0 0
        %622 = vmatmul.mubr.bf16.gmra.mrb[0].mxu0 %v294
        %v623 = vpop.f32.mrb[0].mxu0
        %v624 = vadd.f32 0.0, %v623
        %v625 = vpop.f32.mrb[0].mxu0
        %v626 = vpop.f32.mrb[0].mxu0
        %v627 = vadd.f32 0.0, %v626
        %v628 = vpop.f32.mrb[0].mxu0
        %629 = vmatprep.mubr.bf16.mxu0 0
        %630 = vmatmul.mubr.bf16.gmra.mrb[0].mxu0 %v295
        %v631 = vpop.f32.mrb[0].mxu0
        %v632 = vadd.f32 0.0, %v631
        %v633 = vpop.f32.mrb[0].mxu0
        %v634 = vpop.f32.mrb[0].mxu0
        %v635 = vadd.f32 0.0, %v634
        %v636 = vpop.f32.mrb[0].mxu0
        %637 = vmatprep.mubr.bf16.mxu0 0
        %638 = vmatmul.mubr.bf16.gmra.mrb[0].mxu0 %v296
        %v639 = vpop.f32.mrb[0].mxu0
        %v640 = vadd.f32 0.0, %v639
        %v641 = vpop.f32.mrb[0].mxu0
        %v642 = vpop.f32.mrb[0].mxu0
        %v643 = vadd.f32 0.0, %v642
        %v644 = vpop.f32.mrb[0].mxu0
        %645 = vmatprep.mubr.bf16.mxu0 0
        %646 = vmatmul.mubr.bf16.gmra.mrb[0].mxu0 %v297
        %v647 = vpop.f32.mrb[0].mxu0
        %v648 = vadd.f32 0.0, %v647
        %v649 = vpop.f32.mrb[0].mxu0
        %v650 = vpop.f32.mrb[0].mxu0
        %v651 = vadd.f32 0.0, %v650
        %v652 = vpop.f32.mrb[0].mxu0
        %653 = vmatprep.mubr.bf16.mxu0 0
        %654 = vmatmul.mubr.bf16.gmra.mrb[0].mxu0 %v298
        %v655 = vpop.f32.mrb[0].mxu0
        %v656 = vadd.f32 0.0, %v655
        %v657 = vpop.f32.mrb[0].mxu0
        %v658 = vpop.f32.mrb[0].mxu0
        %v659 = vadd.f32 0.0, %v658
        %v660 = vpop.f32.mrb[0].mxu0
        %661 = vmatprep.mubr.bf16.mxu0 0
        %662 = vmatmul.mubr.bf16.gmra.mrb[0].mxu0 %v299
        %v663 = vpop.f32.mrb[0].mxu0
        %v664 = vadd.f32 0.0, %v663
        %v665 = vpop.f32.mrb[0].mxu0
        %v666 = vpop.f32.mrb[0].mxu0
        %v667 = vadd.f32 0.0, %v666
        %v668 = vpop.f32.mrb[0].mxu0
        %669 = vdwg.mxu0
        %v670 = vpack.c.bf16 %v499, %v495
        %v671 = vpack.c.bf16 %v509, %v505
        %v672 = vpack.c.bf16 %v519, %v515
        %v673 = vpack.c.bf16 %v529, %v525
        %v674 = vpack.c.bf16 %v539, %v535
        %v675 = vpack.c.bf16 %v549, %v545
        %v676 = vpack.c.bf16 %v559, %v555
        %v677 = vpack.c.bf16 %v569, %v565
        %v686 = vunpack.c.l.b16 %v670
        %v687 = vunpack.c.h.b16 %v670
        %v688 = vunpack.c.l.b16 %v671
        %v689 = vunpack.c.h.b16 %v671
        %v690 = vunpack.c.l.b16 %v672
        %v691 = vunpack.c.h.b16 %v672
        %v692 = vunpack.c.l.b16 %v673
        %v693 = vunpack.c.h.b16 %v673
        %v694 = vunpack.c.l.b16 %v674
        %v695 = vunpack.c.h.b16 %v674
        %v696 = vunpack.c.l.b16 %v675
        %v697 = vunpack.c.h.b16 %v675
        %v698 = vunpack.c.l.b16 %v676
        %v699 = vunpack.c.h.b16 %v676
        %v700 = vunpack.c.l.b16 %v677
        %v701 = vunpack.c.h.b16 %v677
        %v702 = vpack.c.b16 %v686, %v686
        %v703 = vpack.c.b16 %v687, %v687
        %v704 = vpack.c.b16 %v688, %v688
        %v705 = vpack.c.b16 %v689, %v689
        %v706 = vpack.c.b16 %v690, %v690
        %v707 = vpack.c.b16 %v691, %v691
        %v708 = vpack.c.b16 %v692, %v692
        %v709 = vpack.c.b16 %v693, %v693
        %v710 = vpack.c.b16 %v694, %v694
        %v711 = vpack.c.b16 %v695, %v695
        %v712 = vpack.c.b16 %v696, %v696
        %v713 = vpack.c.b16 %v697, %v697
        %v714 = vpack.c.b16 %v698, %v698
        %v715 = vpack.c.b16 %v699, %v699
        %v716 = vpack.c.b16 %v700, %v700
        %v717 = vpack.c.b16 %v701, %v701
        %734 = vst [vmem:[%s256] sm:$0xf] %v702
        %735 = vst [vmem:[%s256 + $0x4] sm:$0xf] %v703
        %736 = vst [vmem:[%s256 + $0x8] sm:$0xf] %v704
        %737 = vst [vmem:[%s256 + $0xc] sm:$0xf] %v705
        %738 = vst [vmem:[%s256 + $0x10] sm:$0xf] %v706
        %739 = vst [vmem:[%s256 + $0x14] sm:$0xf] %v707
        %740 = vst [vmem:[%s256 + $0x18] sm:$0xf] %v708
        %741 = vst [vmem:[%s256 + $0x1c] sm:$0xf] %v709
        %742 = vst [vmem:[%s256 + $0x20] sm:$0xf] %v710
        %743 = vst [vmem:[%s256 + $0x24] sm:$0xf] %v711
        %744 = vst [vmem:[%s256 + $0x28] sm:$0xf] %v712
        %745 = vst [vmem:[%s256 + $0x2c] sm:$0xf] %v713
        %746 = vst [vmem:[%s256 + $0x30] sm:$0xf] %v714
        %747 = vst [vmem:[%s256 + $0x34] sm:$0xf] %v715
        %748 = vst [vmem:[%s256 + $0x38] sm:$0xf] %v716
        %749 = vst [vmem:[%s256 + $0x3c] sm:$0xf] %v717
        %v750 = vpack.c.bf16 %v501, %v497
        %v751 = vpack.c.bf16 %v511, %v507
        %v752 = vpack.c.bf16 %v521, %v517
        %v753 = vpack.c.bf16 %v531, %v527
        %v754 = vpack.c.bf16 %v541, %v537
        %v755 = vpack.c.bf16 %v551, %v547
        %v756 = vpack.c.bf16 %v561, %v557
        %v757 = vpack.c.bf16 %v571, %v567
        %v766 = vunpack.c.l.b16 %v750
        %v767 = vunpack.c.h.b16 %v750
        %v768 = vunpack.c.l.b16 %v751
        %v769 = vunpack.c.h.b16 %v751
        %v770 = vunpack.c.l.b16 %v752
        %v771 = vunpack.c.h.b16 %v752
        %v772 = vunpack.c.l.b16 %v753
        %v773 = vunpack.c.h.b16 %v753
        %v774 = vunpack.c.l.b16 %v754
        %v775 = vunpack.c.h.b16 %v754
        %v776 = vunpack.c.l.b16 %v755
        %v777 = vunpack.c.h.b16 %v755
        %v778 = vunpack.c.l.b16 %v756
        %v779 = vunpack.c.h.b16 %v756
        %v780 = vunpack.c.l.b16 %v757
        %v781 = vunpack.c.h.b16 %v757
        %v782 = vpack.c.b16 %v766, %v766
        %v783 = vpack.c.b16 %v767, %v767
        %v784 = vpack.c.b16 %v768, %v768
        %v785 = vpack.c.b16 %v769, %v769
        %v786 = vpack.c.b16 %v770, %v770
        %v787 = vpack.c.b16 %v771, %v771
        %v788 = vpack.c.b16 %v772, %v772
        %v789 = vpack.c.b16 %v773, %v773
        %v790 = vpack.c.b16 %v774, %v774
        %v791 = vpack.c.b16 %v775, %v775
        %v792 = vpack.c.b16 %v776, %v776
        %v793 = vpack.c.b16 %v777, %v777
        %v794 = vpack.c.b16 %v778, %v778
        %v795 = vpack.c.b16 %v779, %v779
        %v796 = vpack.c.b16 %v780, %v780
        %v797 = vpack.c.b16 %v781, %v781
        %814 = vst [vmem:[%s263] sm:$0xf] %v782
        %815 = vst [vmem:[%s263 + $0x4] sm:$0xf] %v783
        %816 = vst [vmem:[%s263 + $0x8] sm:$0xf] %v784
        %817 = vst [vmem:[%s263 + $0xc] sm:$0xf] %v785
        %818 = vst [vmem:[%s263 + $0x10] sm:$0xf] %v786
        %819 = vst [vmem:[%s263 + $0x14] sm:$0xf] %v787
        %820 = vst [vmem:[%s263 + $0x18] sm:$0xf] %v788
        %821 = vst [vmem:[%s263 + $0x1c] sm:$0xf] %v789
        %822 = vst [vmem:[%s263 + $0x20] sm:$0xf] %v790
        %823 = vst [vmem:[%s263 + $0x24] sm:$0xf] %v791
        %824 = vst [vmem:[%s263 + $0x28] sm:$0xf] %v792
        %825 = vst [vmem:[%s263 + $0x2c] sm:$0xf] %v793
        %826 = vst [vmem:[%s263 + $0x30] sm:$0xf] %v794
        %827 = vst [vmem:[%s263 + $0x34] sm:$0xf] %v795
        %828 = vst [vmem:[%s263 + $0x38] sm:$0xf] %v796
        %829 = vst [vmem:[%s263 + $0x3c] sm:$0xf] %v797
        %v830 = vpack.c.bf16 %v611, %v608
        %v831 = vpack.c.bf16 %v619, %v616
        %v832 = vpack.c.bf16 %v627, %v624
        %v833 = vpack.c.bf16 %v635, %v632
        %v834 = vpack.c.bf16 %v643, %v640
        %v835 = vpack.c.bf16 %v651, %v648
        %v836 = vpack.c.bf16 %v659, %v656
        %v837 = vpack.c.bf16 %v667, %v664
        %v846 = vunpack.c.l.b16 %v830
        %v847 = vunpack.c.h.b16 %v830
        %v848 = vunpack.c.l.b16 %v831
        %v849 = vunpack.c.h.b16 %v831
        %v850 = vunpack.c.l.b16 %v832
        %v851 = vunpack.c.h.b16 %v832
        %v852 = vunpack.c.l.b16 %v833
        %v853 = vunpack.c.h.b16 %v833
        %v854 = vunpack.c.l.b16 %v834
        %v855 = vunpack.c.h.b16 %v834
        %v856 = vunpack.c.l.b16 %v835
        %v857 = vunpack.c.h.b16 %v835
        %v858 = vunpack.c.l.b16 %v836
        %v859 = vunpack.c.h.b16 %v836
        %v860 = vunpack.c.l.b16 %v837
        %v861 = vunpack.c.h.b16 %v837
        %v862 = vpack.c.b16 %v846, %v846
        %v863 = vpack.c.b16 %v847, %v847
        %v864 = vpack.c.b16 %v848, %v848
        %v865 = vpack.c.b16 %v849, %v849
        %v866 = vpack.c.b16 %v850, %v850
        %v867 = vpack.c.b16 %v851, %v851
        %v868 = vpack.c.b16 %v852, %v852
        %v869 = vpack.c.b16 %v853, %v853
        %v870 = vpack.c.b16 %v854, %v854
        %v871 = vpack.c.b16 %v855, %v855
        %v872 = vpack.c.b16 %v856, %v856
        %v873 = vpack.c.b16 %v857, %v857
        %v874 = vpack.c.b16 %v858, %v858
        %v875 = vpack.c.b16 %v859, %v859
        %v876 = vpack.c.b16 %v860, %v860
        %v877 = vpack.c.b16 %v861, %v861
        %894 = vst [vmem:[%s270] sm:$0xf] %v862
        %895 = vst [vmem:[%s270 + $0x4] sm:$0xf] %v863
        %896 = vst [vmem:[%s270 + $0x8] sm:$0xf] %v864
        %897 = vst [vmem:[%s270 + $0xc] sm:$0xf] %v865
        %898 = vst [vmem:[%s270 + $0x10] sm:$0xf] %v866
        %899 = vst [vmem:[%s270 + $0x14] sm:$0xf] %v867
        %900 = vst [vmem:[%s270 + $0x18] sm:$0xf] %v868
        %901 = vst [vmem:[%s270 + $0x1c] sm:$0xf] %v869
        %902 = vst [vmem:[%s270 + $0x20] sm:$0xf] %v870
        %903 = vst [vmem:[%s270 + $0x24] sm:$0xf] %v871
        %904 = vst [vmem:[%s270 + $0x28] sm:$0xf] %v872
        %905 = vst [vmem:[%s270 + $0x2c] sm:$0xf] %v873
        %906 = vst [vmem:[%s270 + $0x30] sm:$0xf] %v874
        %907 = vst [vmem:[%s270 + $0x34] sm:$0xf] %v875
        %908 = vst [vmem:[%s270 + $0x38] sm:$0xf] %v876
        %909 = vst [vmem:[%s270 + $0x3c] sm:$0xf] %v877
        %s910 = sand.u32 %s97, 1
        %s911 = scalar_lea.sflag [#allocation4], %s910
        %s912 = sand.u32 %s97, 1
        %s913 = smul.addr %s912, 64
        %s914 = scalar_lea.vmem [#allocation7], %s913
        %s915 = sand.u32 %s26, 1
        %s916 = scalar_lea.sflag [#allocation9], %s915
        %s917 = sand.u32 %s125, 1
        %s918 = smul.addr %s917, 64
        %s919 = scalar_lea.vmem [#allocation8], %s918
        %s920 = sand.u32 %s26, 1
        %s921 = scalar_lea.sflag [#allocation9], %s920
        %s922 = sand.u32 %s153, 1
        %s923 = smul.addr %s922, 64
        %s924 = scalar_lea.vmem [#allocation10], %s923
        // Predicated region
        $region37: #{tpu_custom_call.1} parent=27 // pred_check
          %p925 = pneg %p107
        $region38: #{tpu_custom_call.1} parent=27 // pred_check_branch
          %927 = sbr.rel (%p925) target = $region40
        $region39: #{tpu_custom_call.1} parent=27 // pred_region
          %s928 = smul.u32 16, %s31
          %s930 = ssub.s32 1024, 1024
          %931 = vsyncadd %s911, %s930
          %s932 = smul.addr %s30, 16
          %s933 = sadd.s32 %s928, %s932
          %s934 = smul.addr %s933, 64
          %s935 = scalar_lea.hbm %s2, %s934
          %s936 = sshll.u32 %s914, 4
          %s937 = int_to_ptr.vmem [resolvable:$true] %s936
          %942 = dma.vmem_to_hbm [thread:$0]  %s937, 1024, %s935, %s911, 64, 64, 4
        $region40: #{tpu_custom_call.1} parent=27 // pred_fallthru
          _
        // Predicated region
        $region41: #{tpu_custom_call.1} parent=27 // pred_check
          %p943 = pneg %p135
        $region42: #{tpu_custom_call.1} parent=27 // pred_check_branch
          %945 = sbr.rel (%p943) target = $region44
        $region43: #{tpu_custom_call.1} parent=27 // pred_region
          %s946 = smul.u32 16, %s31
          %s948 = ssub.s32 1024, 1024
          %949 = vsyncadd %s916, %s948
          %s950 = smul.addr %s30, 16
          %s951 = sadd.s32 %s946, %s950
          %s952 = smul.addr %s951, 64
          %s953 = scalar_lea.hbm %s3, %s952
          %s954 = sshll.u32 %s919, 4
          %s955 = int_to_ptr.vmem [resolvable:$true] %s954
          %960 = dma.vmem_to_hbm [thread:$0]  %s955, 1024, %s953, %s916, 64, 64, 4
        $region44: #{tpu_custom_call.1} parent=27 // pred_fallthru
          _
        // Predicated region
        $region45: #{tpu_custom_call.1} parent=27 // pred_check
          %p961 = pneg %p163
        $region46: #{tpu_custom_call.1} parent=27 // pred_check_branch
          %963 = sbr.rel (%p961) target = $region48
        $region47: #{tpu_custom_call.1} parent=27 // pred_region
          %s964 = smul.u32 16, %s31
          %s966 = ssub.s32 1024, 1024
          %967 = vsyncadd %s921, %s966
          %s968 = smul.addr %s30, 16
          %s969 = sadd.s32 %s964, %s968
          %s970 = smul.addr %s969, 64
          %s971 = scalar_lea.hbm %s4, %s970
          %s972 = sshll.u32 %s924, 4
          %s973 = int_to_ptr.vmem [resolvable:$true] %s972
          %978 = dma.vmem_to_hbm [thread:$0]  %s973, 1024, %s971, %s921, 64, 64, 4
        $region48: #{tpu_custom_call.1} parent=27 // pred_fallthru
          _
      $region28: #{tpu_custom_call.1} parent=5 // pred_fallthru
        _
      %p979 = scmp.le.s32.totalorder 2, %s21
      // Predicated region
      $region49: #{tpu_custom_call.1} parent=5 // pred_check
        %p980 = pneg %p979
      $region50: #{tpu_custom_call.1} parent=5 // pred_check_branch
        %982 = sbr.rel (%p980) target = $region52
      $region51: #{tpu_custom_call.1} parent=5 // pred_region
        %s983 = ssub.s32 %s21, 2
        // Predicated region
        $region53: #{tpu_custom_call.1} parent=51 // pred_check
          %p984 = pneg %p113
        $region54: #{tpu_custom_call.1} parent=51 // pred_check_branch
          %986 = sbr.rel (%p984) target = $region56
        $region55: #{tpu_custom_call.1} parent=51 // pred_region
          %s987 = sand.u32 %s98, 1
          %s988 = scalar_lea.sflag [#allocation4], %s987
          %s989 = sand.u32 %s98, 1
          %s990 = smul.addr %s989, 64
          %s991 = scalar_lea.vmem [#allocation7], %s990
          %992 = dma.done %s988, 1024
        $region56: #{tpu_custom_call.1} parent=51 // pred_fallthru
          _
        // Predicated region
        $region57: #{tpu_custom_call.1} parent=51 // pred_check
          %p993 = pneg %p141
        $region58: #{tpu_custom_call.1} parent=51 // pred_check_branch
          %995 = sbr.rel (%p993) target = $region60
        $region59: #{tpu_custom_call.1} parent=51 // pred_region
          %s996 = sand.u32 %s27, 1
          %s997 = scalar_lea.sflag [#allocation9], %s996
          %s998 = sand.u32 %s126, 1
          %s999 = smul.addr %s998, 64
          %s1000 = scalar_lea.vmem [#allocation8], %s999
          %1001 = dma.done %s997, 1024
        $region60: #{tpu_custom_call.1} parent=51 // pred_fallthru
          _
        // Predicated region
        $region61: #{tpu_custom_call.1} parent=51 // pred_check
          %p1002 = pneg %p169
        $region62: #{tpu_custom_call.1} parent=51 // pred_check_branch
          %1004 = sbr.rel (%p1002) target = $region64
        $region63: #{tpu_custom_call.1} parent=51 // pred_region
          %s1005 = sand.u32 %s27, 1
          %s1006 = scalar_lea.sflag [#allocation9], %s1005
          %s1007 = sand.u32 %s154, 1
          %s1008 = smul.addr %s1007, 64
          %s1009 = scalar_lea.vmem [#allocation10], %s1008
          %1010 = dma.done %s1006, 1024
        $region64: #{tpu_custom_call.1} parent=51 // pred_fallthru
          _
      $region52: #{tpu_custom_call.1} parent=5 // pred_fallthru
        _
    $region6: #{tpu_custom_call.1} parent=1 // loop_footer
      %s25 = sadd.s32 1, %s21
    $region7: #{tpu_custom_call.1} parent=1 // loop_footer_branch
      %20 = sbr.rel target = $region3
    $region8: #{tpu_custom_call.1} parent=1 // loop_exit
      _
    %1011 = vsyncpa [#allocation3], 1
    %s1012 = scalar_lea.sflag [#allocation3], 1
    %1013 = vsyncpa %s1012, 1
    %1014 = vsyncpa [#allocation6], 1
    %1015 = vsyncpa [#allocation4], 1
    %s1016 = scalar_lea.sflag [#allocation4], 1
    %1017 = vsyncpa %s1016, 1
    %1018 = vsyncpa [#allocation9], 1
    %s1019 = scalar_lea.sflag [#allocation9], 1
    %1020 = vsyncpa %s1019, 1

</llo_original>
